<compile_context>
chip_gen: v6e
topology: v6e:2x2x1
jax: 0.10.0
libtpu: 0.0.40
codegen_flags: <defaults>
</compile_context>

<pallas_src>
import functools

import jax
import jax.numpy as jnp
from jax.experimental import pallas as pl
from jax.experimental.pallas import tpu as pltpu

BN_EPS = 1e-5
OUT_PAD = 128                       # pad Linear2 output to lane-dense 128 columns
VMEM_LIMIT_BYTES = 48 * 1024 * 1024  # < physical VMEM on v5e/v6e (128 MiB) and v7x (64 MiB/TC)


# -----------------------------------------------------------------------------
# Kernels
# -----------------------------------------------------------------------------
def _fused_kernel(x_ref, w1_ref, b1_ref, gamma_ref, beta_ref, w2_ref, b2_ref,
                  o_ref, *, compute_dtype):
    """Whole forward pass for a VMEM-resident batch (BN stats over that batch)."""
    # f32 -> compute-dtype cast happens on the VMEM block (free under MXU/DMA),
    # not as a separate un-hidden XLA pass in the wrapper.
    x = x_ref[...].astype(compute_dtype)

    # Linear(784 -> 512): MXU matmul with f32 accumulation.
    h = jnp.dot(x, w1_ref[...], preferred_element_type=jnp.float32) + b1_ref[...]

    # BatchNorm1d (training-mode, biased variance), folded into scale/shift.
    mean = jnp.mean(h, axis=0, keepdims=True)
    d = h - mean
    var = jnp.mean(d * d, axis=0, keepdims=True)
    scale = gamma_ref[...] * jax.lax.rsqrt(var + BN_EPS)       # rsqrt -> EUP
    hr = jnp.maximum(d * scale + beta_ref[...], 0.0)           # one FMA + ReLU (f32)

    # Linear(512 -> 10), padded to 128 lane-dense output columns.
    o_ref[...] = jnp.dot(hr.astype(compute_dtype), w2_ref[...],
                         preferred_element_type=jnp.float32) + b2_ref[...]


def _pass1_kernel(x_ref, w1_ref, b1_ref, h_ref, stats_ref, *,
                  valid_b, tile_b, compute_dtype):
    """Pass 1 (per batch tile): Linear1 + partial sum / sum-of-squares for BN."""
    i = pl.program_id(0)
    n = pl.num_programs(0)

    x = x_ref[...].astype(compute_dtype)          # in-kernel cast, no wrapper pass
    h = jnp.dot(x, w1_ref[...], preferred_element_type=jnp.float32) + b1_ref[...]
    # Store h in the compute dtype (bf16 on the bf16 path) -> halves the h
    # HBM round trip; stays f32 on the f32 path for accuracy.
    h_ref[...] = h.astype(h_ref.dtype)

    @pl.when(i < n - 1)
    def _():
        # Interior tiles never contain batch padding: plain unmasked sums.
        stats_ref[0, 0:1, :] = jnp.sum(h, axis=0, keepdims=True)
        stats_ref[0, 1:2, :] = jnp.sum(h * h, axis=0, keepdims=True)

    @pl.when(i == n - 1)
    def _():
        # Only the final tile may contain padded rows; mask them so the BN
        # statistics are computed over the true batch only.
        row = jax.lax.broadcasted_iota(jnp.int32, (tile_b, 1), 0) + i * tile_b
        hm = jnp.where(row < valid_b, h, 0.0)
        stats_ref[0, 0:1, :] = jnp.sum(hm, axis=0, keepdims=True)
        stats_ref[0, 1:2, :] = jnp.sum(hm * hm, axis=0, keepdims=True)


def _pass2_kernel(h_ref, stats_ref, gamma_ref, beta_ref, w2_ref, b2_ref, o_ref,
                  *, valid_b, compute_dtype):
    """Pass 2 (per batch tile): in-kernel stats reduce + BN + ReLU + Linear2."""
    # Cross-tile stats reduction and BN affine fold are done here (redundantly
    # per tile -- a few thousand VPU adds, noise next to the matmul).  This
    # removes the standalone XLA reduction between the two pallas_calls.
    st = jnp.sum(stats_ref[...], axis=0)                       # (2, d_hid) f32
    inv_b = jnp.float32(1.0 / valid_b)
    mean = st[0:1, :] * inv_b
    var = jnp.maximum(st[1:2, :] * inv_b - mean * mean, 0.0)
    scale = gamma_ref[...] * jax.lax.rsqrt(var + BN_EPS)       # rsqrt -> EUP
    shift = beta_ref[...] - mean * scale

    hr = jnp.maximum(h_ref[...].astype(jnp.float32) * scale + shift, 0.0)
    o_ref[...] = jnp.dot(hr.astype(compute_dtype), w2_ref[...],
                         preferred_element_type=jnp.float32) + b2_ref[...]


# -----------------------------------------------------------------------------
# Parameters
# -----------------------------------------------------------------------------
def init_params(key, num_classes=10):
    """Deterministic parameter init mimicking PyTorch defaults (U(+/-1/sqrt(fan_in)))."""
    k1, k2, k3, k4 = jax.random.split(key, 4)
    in1, out1 = 28 * 28, 512
    in2, out2 = 512, num_classes
    lim1 = 1.0 / jnp.sqrt(jnp.float32(in1))
    lim2 = 1.0 / jnp.sqrt(jnp.float32(in2))
    return {
        "w1": jax.random.uniform(k1, (out1, in1), jnp.float32, -lim1, lim1),
        "b1": jax.random.uniform(k2, (out1,), jnp.float32, -lim1, lim1),
        "gamma": jnp.ones((out1,), jnp.float32),   # BatchNorm1d weight
        "beta": jnp.zeros((out1,), jnp.float32),   # BatchNorm1d bias
        "w2": jax.random.uniform(k3, (out2, in2), jnp.float32, -lim2, lim2),
        "b2": jax.random.uniform(k4, (out2,), jnp.float32, -lim2, lim2),
    }


def prepare_params(params, compute_dtype=jnp.bfloat16):
    """One-time weight prep (do NOT call per forward pass):
    transpose Linear weights, pad Linear2 to 128 output columns, cast matmul
    weights to the MXU compute dtype (bf16 by default), keep bias/BN in f32."""
    num_classes, d_hid = params["w2"].shape
    w1t = jnp.asarray(params["w1"].T, dtype=compute_dtype)              # (784, 512)
    w2t = jnp.zeros((d_hid, OUT_PAD), dtype=compute_dtype)
    w2t = w2t.at[:, :num_classes].set(params["w2"].T.astype(compute_dtype))
    b2p = jnp.zeros((1, OUT_PAD), jnp.float32).at[:, :num_classes].set(params["b2"])
    return {
        "w1t": w1t,                                                     # (784, 512) compute dtype
        "b1": params["b1"].reshape(1, -1).astype(jnp.float32),          # (1, 512)
        "gamma": params["gamma"].reshape(1, -1).astype(jnp.float32),    # (1, 512)
        "beta": params["beta"].reshape(1, -1).astype(jnp.float32),      # (1, 512)
        "w2t": w2t,                                                     # (512, 128) compute dtype
        "b2p": b2p,                                                     # (1, 128)
    }


# -----------------------------------------------------------------------------
# Forward
# -----------------------------------------------------------------------------
def _forward_fused(x2d, p, compute_dtype):
    B = x2d.shape[0]
    vmem = pl.BlockSpec(memory_space=pltpu.MemorySpace.VMEM)
    return pl.pallas_call(
        functools.partial(_fused_kernel, compute_dtype=compute_dtype),
        out_shape=jax.ShapeDtypeStruct((B, OUT_PAD), jnp.float32),
        in_specs=[vmem] * 7,
        out_specs=vmem,
        compiler_params=pltpu.CompilerParams(vmem_limit_bytes=VMEM_LIMIT_BYTES),
    )(x2d, p["w1t"], p["b1"], p["gamma"], p["beta"], p["w2t"], p["b2p"])


def _forward_tiled(x2d, p, compute_dtype, tile_b):
    B, d_in = x2d.shape
    d_hid = p["w1t"].shape[1]
    n_tiles = pl.cdiv(B, tile_b)
    Bp = n_tiles * tile_b
    if Bp != B:
        x2d = jnp.pad(x2d, ((0, Bp - B), (0, 0)))

    # h intermediate stored in the compute dtype (bf16 path -> half the bytes).
    h_dtype = compute_dtype

    # -- pass 1: Linear1 + per-tile partial sum / sum-of-squares ---------------
    h, stats = pl.pallas_call(
        functools.partial(_pass1_kernel, valid_b=B, tile_b=tile_b,
                          compute_dtype=compute_dtype),
        grid=(n_tiles,),
        out_shape=(
            jax.ShapeDtypeStruct((Bp, d_hid), h_dtype),
            jax.ShapeDtypeStruct((n_tiles, 2, d_hid), jnp.float32),
        ),
        in_specs=[
            pl.BlockSpec((tile_b, d_in), lambda i: (i, 0)),
            # Constant index_map -> block fetched once, VMEM-resident across tiles.
            pl.BlockSpec((d_in, d_hid), lambda i: (0, 0)),
            pl.BlockSpec((1, d_hid), lambda i: (0, 0)),
        ],
        out_specs=(
            pl.BlockSpec((tile_b, d_hid), lambda i: (i, 0)),
            pl.BlockSpec((1, 2, d_hid), lambda i: (i, 0, 0)),
        ),
        compiler_params=pltpu.CompilerParams(
            dimension_semantics=("parallel",),
            vmem_limit_bytes=VMEM_LIMIT_BYTES),
    )(x2d, p["w1t"], p["b1"])

    # -- pass 2: in-kernel stats reduce + BN scale/shift + ReLU + Linear2 ------
    out = pl.pallas_call(
        functools.partial(_pass2_kernel, valid_b=B, compute_dtype=compute_dtype),
        grid=(n_tiles,),
        out_shape=jax.ShapeDtypeStruct((Bp, OUT_PAD), jnp.float32),
        in_specs=[
            pl.BlockSpec((tile_b, d_hid), lambda i: (i, 0)),
            pl.BlockSpec((n_tiles, 2, d_hid), lambda i: (0, 0, 0)),   # whole stats array
            pl.BlockSpec((1, d_hid), lambda i: (0, 0)),
            pl.BlockSpec((1, d_hid), lambda i: (0, 0)),
            pl.BlockSpec((d_hid, OUT_PAD), lambda i: (0, 0)),
            pl.BlockSpec((1, OUT_PAD), lambda i: (0, 0)),
        ],
        out_specs=pl.BlockSpec((tile_b, OUT_PAD), lambda i: (i, 0)),
        compiler_params=pltpu.CompilerParams(
            dimension_semantics=("parallel",),
            vmem_limit_bytes=VMEM_LIMIT_BYTES),
    )(h, stats, p["gamma"], p["beta"], p["w2t"], p["b2p"])
    # NOTE: padded batch rows (>= B) carry garbage logits; they are sliced off.
    return out


@functools.partial(jax.jit, static_argnames=("tile_b", "fused_max_b",
                                             "num_classes", "return_padded"))
def _dnn_forward_jit(x_nchw, prepped, *, tile_b, fused_max_b, num_classes,
                     return_padded):
    B = x_nchw.shape[0]
    compute_dtype = prepped["w1t"].dtype
    x2d = x_nchw.reshape(B, -1)          # torch .view(B, -1); dtype cast happens in-kernel
    if B <= fused_max_b:
        out = _forward_fused(x2d, prepped, compute_dtype)
    else:
        out = _forward_tiled(x2d, prepped, compute_dtype, tile_b)
    if return_padded:
        return out                       # (Bp, 128) lane-dense; slice lazily downstream
    return out[:B, :num_classes]


def _device_defaults():
    """(tile_b, fused_max_b) tuned per TPU generation (resolved outside jit)."""
    try:
        kind = jax.devices()[0].device_kind.lower()
    except Exception:
        kind = ""
    if "v7" in kind:
        # 2 TensorCores/chip, 64 MiB VMEM: route mid-size batches through the
        # tiled grid so ("parallel",) shards batch tiles across both cores.
        return 512, 512
    if "v5" in kind:
        return 512, 1024      # smaller default scoped VMEM: keep tiles moderate
    return 1024, 2048         # v6e / fallback: bigger tiles, roomier VMEM budget


def dnn_forward(x_nchw, prepped, *, tile_b=None, fused_max_b=None,
                num_classes=10, return_padded=False):
    d_tile, d_fused = _device_defaults()
    tile_b = d_tile if tile_b is None else tile_b
    fused_max_b = d_fused if fused_max_b is None else fused_max_b
    return _dnn_forward_jit(x_nchw, prepped, tile_b=tile_b,
                            fused_max_b=fused_max_b, num_classes=num_classes,
                            return_padded=return_padded)


def dnn_reference(x_nchw, params):
    """Pure-JAX f32 reference (training-mode BN), for correctness checking."""
    B = x_nchw.shape[0]
    x = x_nchw.reshape(B, -1).astype(jnp.float32)
    h = x @ params["w1"].T + params["b1"]
    mean = jnp.mean(h, axis=0, keepdims=True)
    var = jnp.mean((h - mean) ** 2, axis=0, keepdims=True)
    hn = (h - mean) * jax.lax.rsqrt(var + BN_EPS) * params["gamma"] + params["beta"]
    hr = jnp.maximum(hn, 0.0)
    return hr @ params["w2"].T + params["b2"]


if __name__ == "__main__":
    key = jax.random.PRNGKey(0)
    pkey, xkey1, xkey2 = jax.random.split(key, 3)
    params = init_params(pkey, num_classes=10)

    # One-time weight prep (hoisted out of the per-call path).
    prep_f32 = prepare_params(params, compute_dtype=jnp.float32)
    prep_bf16 = prepare_params(params, compute_dtype=jnp.bfloat16)

    # ---- small FashionMNIST-like batch, fused single-call path --------------
    B_small = 4
    x_small = jax.random.normal(xkey1, (B_small, 1, 28, 28), dtype=jnp.float32)
    ref_small = dnn_reference(x_small, params)

    out_f32 = jax.block_until_ready(dnn_forward(x_small, prep_f32))
    assert out_f32.shape == (B_small, 10), out_f32.shape
    assert jnp.allclose(out_f32, ref_small, atol=1e-4, rtol=1e-4), "f32 fused mismatch"

    out_bf16 = jax.block_until_ready(dnn_forward(x_small, prep_bf16))
    assert jnp.allclose(out_bf16, ref_small, atol=5e-2, rtol=5e-2), "bf16 fused mismatch"

    # ---- non-multiple batch exercising the tiled two-pass path (padding) ----
    B_big = 130
    x_big = jax.random.normal(xkey2, (B_big, 1, 28, 28), dtype=jnp.float32)
    ref_big = dnn_reference(x_big, params)

    out_big_f32 = jax.block_until_ready(
        dnn_forward(x_big, prep_f32, tile_b=128, fused_max_b=0))
    assert out_big_f32.shape == (B_big, 10), out_big_f32.shape
    assert jnp.allclose(out_big_f32, ref_big, atol=2e-3, rtol=2e-3), "f32 tiled mismatch"

    out_big_bf16 = jax.block_until_ready(
        dnn_forward(x_big, prep_bf16, tile_b=128, fused_max_b=0))
    assert jnp.allclose(out_big_bf16, ref_big, atol=5e-2, rtol=5e-2), "bf16 tiled mismatch"

    print("KERNEL_OK")
</pallas_src>

<mosaic_0001>
module attributes {stable_mosaic.version = 11 : i64} {
  func.func @_fused_kernel(%arg0: memref<4x784xf32, #tpu.memory_space<vmem>>, %arg1: memref<784x512xf32, #tpu.memory_space<vmem>>, %arg2: memref<1x512xf32, #tpu.memory_space<vmem>>, %arg3: memref<1x512xf32, #tpu.memory_space<vmem>>, %arg4: memref<1x512xf32, #tpu.memory_space<vmem>>, %arg5: memref<512x128xf32, #tpu.memory_space<vmem>>, %arg6: memref<1x128xf32, #tpu.memory_space<vmem>>, %arg7: memref<4x128xf32, #tpu.memory_space<vmem>>) attributes {dimension_semantics = [], scalar_prefetch = 0 : i64, scratch_operands = 0 : i64, tpu.core_type = #tpu.core_type<tc>} {
    %c0 = arith.constant 0 : index
    %c0_0 = arith.constant 0 : index
    %0 = vector.load %arg0[%c0, %c0_0] : memref<4x784xf32, #tpu.memory_space<vmem>>, vector<4x784xf32>
    %c0_1 = arith.constant 0 : index
    %c0_2 = arith.constant 0 : index
    %1 = vector.load %arg1[%c0_1, %c0_2] : memref<784x512xf32, #tpu.memory_space<vmem>>, vector<784x512xf32>
    %cst = arith.constant dense<0.000000e+00> : vector<4x512xf32>
    %2 = tpu.matmul %0, %1, %cst {dimension_numbers = #tpu.dot_dimension_numbers<[1], [0], [0], [1], [0, 0, 1, 1], [], []>} : vector<4x784xf32>, vector<784x512xf32>, vector<4x512xf32> -> vector<4x512xf32>
    %c0_3 = arith.constant 0 : index
    %c0_4 = arith.constant 0 : index
    %3 = vector.load %arg2[%c0_3, %c0_4] : memref<1x512xf32, #tpu.memory_space<vmem>>, vector<1x512xf32>
    %4 = vector.broadcast %3 : vector<1x512xf32> to vector<4x512xf32>
    %5 = arith.addf %2, %4 : vector<4x512xf32>
    %cst_5 = arith.constant dense<0.000000e+00> : vector<512xf32>
    %6 = vector.multi_reduction <add>, %5, %cst_5 [0] : vector<4x512xf32> to vector<512xf32>
    %7 = vector.shape_cast %6 : vector<512xf32> to vector<1x512xf32>
    %cst_6 = arith.constant 4.000000e+00 : f32
    %8 = vector.broadcast %cst_6 : f32 to vector<1x512xf32>
    %9 = arith.divf %7, %8 : vector<1x512xf32>
    %10 = vector.broadcast %9 : vector<1x512xf32> to vector<4x512xf32>
    %11 = arith.subf %5, %10 : vector<4x512xf32>
    %12 = arith.mulf %11, %11 : vector<4x512xf32>
    %cst_7 = arith.constant dense<0.000000e+00> : vector<512xf32>
    %13 = vector.multi_reduction <add>, %12, %cst_7 [0] : vector<4x512xf32> to vector<512xf32>
    %14 = vector.shape_cast %13 : vector<512xf32> to vector<1x512xf32>
    %cst_8 = arith.constant 4.000000e+00 : f32
    %15 = vector.broadcast %cst_8 : f32 to vector<1x512xf32>
    %16 = arith.divf %14, %15 : vector<1x512xf32>
    %c0_9 = arith.constant 0 : index
    %c0_10 = arith.constant 0 : index
    %17 = vector.load %arg3[%c0_9, %c0_10] : memref<1x512xf32, #tpu.memory_space<vmem>>, vector<1x512xf32>
    %cst_11 = arith.constant 9.99999974E-6 : f32
    %18 = vector.broadcast %cst_11 : f32 to vector<1x512xf32>
    %19 = arith.addf %16, %18 : vector<1x512xf32>
    %20 = math.rsqrt %19 : vector<1x512xf32>
    %21 = arith.mulf %17, %20 : vector<1x512xf32>
    %22 = vector.broadcast %21 : vector<1x512xf32> to vector<4x512xf32>
    %23 = arith.mulf %11, %22 : vector<4x512xf32>
    %c0_12 = arith.constant 0 : index
    %c0_13 = arith.constant 0 : index
    %24 = vector.load %arg4[%c0_12, %c0_13] : memref<1x512xf32, #tpu.memory_space<vmem>>, vector<1x512xf32>
    %25 = vector.broadcast %24 : vector<1x512xf32> to vector<4x512xf32>
    %26 = arith.addf %23, %25 : vector<4x512xf32>
    %cst_14 = arith.constant 0.000000e+00 : f32
    %27 = vector.broadcast %cst_14 : f32 to vector<4x512xf32>
    %28 = arith.maximumf %26, %27 : vector<4x512xf32>
    %c0_15 = arith.constant 0 : index
    %c0_16 = arith.constant 0 : index
    %29 = vector.load %arg5[%c0_15, %c0_16] : memref<512x128xf32, #tpu.memory_space<vmem>>, vector<512x128xf32>
    %cst_17 = arith.constant dense<0.000000e+00> : vector<4x128xf32>
    %30 = tpu.matmul %28, %29, %cst_17 {dimension_numbers = #tpu.dot_dimension_numbers<[1], [0], [0], [1], [0, 0, 1, 1], [], []>} : vector<4x512xf32>, vector<512x128xf32>, vector<4x128xf32> -> vector<4x128xf32>
    %c0_18 = arith.constant 0 : index
    %c0_19 = arith.constant 0 : index
    %31 = vector.load %arg6[%c0_18, %c0_19] : memref<1x128xf32, #tpu.memory_space<vmem>>, vector<1x128xf32>
    %32 = vector.broadcast %31 : vector<1x128xf32> to vector<4x128xf32>
    %33 = arith.addf %30, %32 : vector<4x128xf32>
    %c0_20 = arith.constant 0 : index
    %c0_21 = arith.constant 0 : index
    %34 = vector.load %arg7[%c0_20, %c0_21] : memref<4x128xf32, #tpu.memory_space<vmem>>, vector<4x128xf32>
    tpu.vector_store %arg7[%c0_20, %c0_21], %33 {strides = array<i32>} : memref<4x128xf32, #tpu.memory_space<vmem>>, vector<4x128xf32>,
    return
  }
}

</mosaic_0001>

<llo_original>
// kernel: _dnn_forward_jit.1
$region0: #{_dnn_forward_jit.1}
  #allocation0 [shape = 'u32[]', space=smem, size = 0x4, offset = 0x4, fixed_abs, tag = 'smem constant byte address 0x4 - core index']
  #allocation1 [shape = 'u32[144,128]{1,0:T(1,128)}', space=vmem, size = 0x12000, scoped, tag = 'internal scratch']
  %s0 = inlined_call_operand.vmem [shape: f32[4,784], index: 0, kind: input, shape index: {}]
  %s1 = inlined_call_operand.hbm [shape: f32[784,512], index: 1, kind: input, shape index: {}]
  %s2 = inlined_call_operand.hbm [shape: f32[1,512], index: 2, kind: input, shape index: {}]
  %s3 = inlined_call_operand.hbm [shape: f32[1,512], index: 3, kind: input, shape index: {}]
  %s4 = inlined_call_operand.hbm [shape: f32[1,512], index: 4, kind: input, shape index: {}]
  %s5 = inlined_call_operand.hbm [shape: f32[512,128], index: 5, kind: input, shape index: {}]
  %s6 = inlined_call_operand.hbm [shape: f32[1,128], index: 6, kind: input, shape index: {}]
  %s7 = inlined_call_operand.hbm [shape: f32[4,128], index: 7, kind: output, shape index: {}]
  %s8 = sld [smem:[#allocation0]]
  $region62: #{_dnn_forward_jit.1} parent=0
    _
  %s10 = ssub.s32 1, %s8
  %s11 = scalar_select 0, %s10, %s8
  $region1: #{_dnn_forward_jit.1} parent=0
    #allocation2 [shape = 'u8[1605632]{0}', space=vmem, size = 0x188000, scoped, tag = 'input window, operand 1, single buffered']
    #allocation3 [shape = 's32[1]{0}', space=sflag, size = 0x4, scoped, tag = 'scoped memory for _dnn_forward_jit.1']
    #allocation4 [shape = 's32[1]{0}', space=sflag, size = 0x4, scoped, tag = 'scoped memory for _dnn_forward_jit.1']
    #allocation5 [shape = 'u8[2048]{0}', space=vmem, size = 0x800, scoped, tag = 'input window, operand 2, single buffered']
    #allocation6 [shape = 's32[1]{0}', space=sflag, size = 0x4, scoped, tag = 'scoped memory for _dnn_forward_jit.1']
    #allocation7 [shape = 'u8[2048]{0}', space=vmem, size = 0x800, scoped, tag = 'input window, operand 3, single buffered']
    #allocation8 [shape = 'u8[2048]{0}', space=vmem, size = 0x800, scoped, tag = 'input window, operand 4, single buffered']
    #allocation9 [shape = 's32[1]{0}', space=sflag, size = 0x4, scoped, tag = 'scoped memory for _dnn_forward_jit.1']
    #allocation10 [shape = 'u8[262144]{0}', space=vmem, size = 0x40000, scoped, tag = 'input window, operand 5, single buffered']
    #allocation11 [shape = 'u8[512]{0}', space=vmem, size = 0x400, scoped, tag = 'input window, operand 6, single buffered']
    #allocation12 [shape = 's32[1]{0}', space=sflag, size = 0x4, scoped, tag = 'scoped memory for _dnn_forward_jit.1']
    #allocation13 [shape = 'u8[2048]{0}', space=vmem, size = 0x800, scoped, tag = 'output window, operand 0, single buffered']
    %12 = vsyncpa [#allocation3], 0
    %13 = vsyncpa [#allocation6], 0
    %14 = vsyncpa [#allocation9], 0
    %15 = vsyncpa [#allocation12], 0
    %16 = vsyncpa [#allocation4], 0
    // Predicated region
    $region2: #{_dnn_forward_jit.1} parent=1 // pred_check
      _
    $region3: #{_dnn_forward_jit.1} parent=1 // pred_check_branch
      %18 = sbr.rel (0) target = $region5
    $region4: #{_dnn_forward_jit.1} parent=1 // pred_region
      _
    $region5: #{_dnn_forward_jit.1} parent=1 // pred_fallthru
      _
    // Predicated region
    $region6: #{_dnn_forward_jit.1} parent=1 // pred_check
      _
    $region7: #{_dnn_forward_jit.1} parent=1 // pred_check_branch
      %20 = sbr.rel (0) target = $region9
    $region8: #{_dnn_forward_jit.1} parent=1 // pred_region
      %s22 = ssub.s32 50176, 50176
      %23 = vsyncadd [#allocation3], %s22
      %s24 = sshll.u32 [#allocation2], 4
      %s25 = int_to_ptr.vmem [resolvable:$true] %s24
      %30 = dma.hbm_to_vmem [thread:$0]  %s1, 50176, %s25, [#allocation3], 512, 512, 32
    $region9: #{_dnn_forward_jit.1} parent=1 // pred_fallthru
      _
    // Predicated region
    $region10: #{_dnn_forward_jit.1} parent=1 // pred_check
      _
    $region11: #{_dnn_forward_jit.1} parent=1 // pred_check_branch
      %32 = sbr.rel (0) target = $region13
    $region12: #{_dnn_forward_jit.1} parent=1 // pred_region
      %s34 = ssub.s32 64, 64
      %35 = vsyncadd [#allocation6], %s34
      %s37 = sshll.u32 [#allocation5], 4
      %s38 = int_to_ptr.vmem [resolvable:$true] %s37
      %40 = dma.hbm_to_vmem [thread:$0]  %s2, 64, %s38, [#allocation6]
    $region13: #{_dnn_forward_jit.1} parent=1 // pred_fallthru
      _
    // Predicated region
    $region14: #{_dnn_forward_jit.1} parent=1 // pred_check
      _
    $region15: #{_dnn_forward_jit.1} parent=1 // pred_check_branch
      %42 = sbr.rel (0) target = $region17
    $region16: #{_dnn_forward_jit.1} parent=1 // pred_region
      %s44 = ssub.s32 64, 64
      %45 = vsyncadd [#allocation6], %s44
      %s47 = sshll.u32 [#allocation7], 4
      %s48 = int_to_ptr.vmem [resolvable:$true] %s47
      %50 = dma.hbm_to_vmem [thread:$0]  %s3, 64, %s48, [#allocation6]
    $region17: #{_dnn_forward_jit.1} parent=1 // pred_fallthru
      _
    // Predicated region
    $region18: #{_dnn_forward_jit.1} parent=1 // pred_check
      _
    $region19: #{_dnn_forward_jit.1} parent=1 // pred_check_branch
      %52 = sbr.rel (0) target = $region21
    $region20: #{_dnn_forward_jit.1} parent=1 // pred_region
      %s54 = ssub.s32 64, 64
      %55 = vsyncadd [#allocation9], %s54
      %s57 = sshll.u32 [#allocation8], 4
      %s58 = int_to_ptr.vmem [resolvable:$true] %s57
      %60 = dma.hbm_to_vmem [thread:$0]  %s4, 64, %s58, [#allocation9]
    $region21: #{_dnn_forward_jit.1} parent=1 // pred_fallthru
      _
    // Predicated region
    $region22: #{_dnn_forward_jit.1} parent=1 // pred_check
      _
    $region23: #{_dnn_forward_jit.1} parent=1 // pred_check_branch
      %62 = sbr.rel (0) target = $region25
    $region24: #{_dnn_forward_jit.1} parent=1 // pred_region
      %s64 = ssub.s32 8192, 8192
      %65 = vsyncadd [#allocation9], %s64
      %s66 = sshll.u32 [#allocation10], 4
      %s67 = int_to_ptr.vmem [resolvable:$true] %s66
      %72 = dma.hbm_to_vmem [thread:$0]  %s5, 8192, %s67, [#allocation9], 128, 128, 8
    $region25: #{_dnn_forward_jit.1} parent=1 // pred_fallthru
      _
    // Predicated region
    $region26: #{_dnn_forward_jit.1} parent=1 // pred_check
      _
    $region27: #{_dnn_forward_jit.1} parent=1 // pred_check_branch
      %74 = sbr.rel (0) target = $region29
    $region28: #{_dnn_forward_jit.1} parent=1 // pred_region
      %s76 = ssub.s32 16, 16
      %77 = vsyncadd [#allocation12], %s76
      %s79 = sshll.u32 [#allocation11], 4
      %s80 = int_to_ptr.vmem [resolvable:$true] %s79
      %82 = dma.hbm_to_vmem [thread:$0]  %s6, 16, %s80, [#allocation12]
    $region29: #{_dnn_forward_jit.1} parent=1 // pred_fallthru
      _
    // Predicated region
    $region30: #{_dnn_forward_jit.1} parent=1 // pred_check
      _
    $region31: #{_dnn_forward_jit.1} parent=1 // pred_check_branch
      %84 = sbr.rel (0) target = $region33
    $region32: #{_dnn_forward_jit.1} parent=1 // pred_region
      %85 = dma.done [#allocation3], 50176
    $region33: #{_dnn_forward_jit.1} parent=1 // pred_fallthru
      _
    // Predicated region
    $region34: #{_dnn_forward_jit.1} parent=1 // pred_check
      _
    $region35: #{_dnn_forward_jit.1} parent=1 // pred_check_branch
      %87 = sbr.rel (0) target = $region37
    $region36: #{_dnn_forward_jit.1} parent=1 // pred_region
      %88 = dma.done [#allocation6], 64
    $region37: #{_dnn_forward_jit.1} parent=1 // pred_fallthru
      _
    // Predicated region
    $region38: #{_dnn_forward_jit.1} parent=1 // pred_check
      _
    $region39: #{_dnn_forward_jit.1} parent=1 // pred_check_branch
      %90 = sbr.rel (0) target = $region41
    $region40: #{_dnn_forward_jit.1} parent=1 // pred_region
      %91 = dma.done [#allocation6], 64
    $region41: #{_dnn_forward_jit.1} parent=1 // pred_fallthru
      _
    // Predicated region
    $region42: #{_dnn_forward_jit.1} parent=1 // pred_check
      _
    $region43: #{_dnn_forward_jit.1} parent=1 // pred_check_branch
      %93 = sbr.rel (0) target = $region45
    $region44: #{_dnn_forward_jit.1} parent=1 // pred_region
      %94 = dma.done [#allocation9], 64
    $region45: #{_dnn_forward_jit.1} parent=1 // pred_fallthru
      _
    // Predicated region
    $region46: #{_dnn_forward_jit.1} parent=1 // pred_check
      _
    $region47: #{_dnn_forward_jit.1} parent=1 // pred_check_branch
      %96 = sbr.rel (0) target = $region49
    $region48: #{_dnn_forward_jit.1} parent=1 // pred_region
      %97 = dma.done [#allocation9], 8192
    $region49: #{_dnn_forward_jit.1} parent=1 // pred_fallthru
      _
    // Predicated region
    $region50: #{_dnn_forward_jit.1} parent=1 // pred_check
      _
    $region51: #{_dnn_forward_jit.1} parent=1 // pred_check_branch
      %99 = sbr.rel (0) target = $region53
    $region52: #{_dnn_forward_jit.1} parent=1 // pred_region
      %100 = dma.done [#allocation12], 16
    $region53: #{_dnn_forward_jit.1} parent=1 // pred_fallthru
      _
    %v101 = vld [vmem:[%s0] sm:$0xff]
    %v102 = vld [vmem:[%s0 + $0x8] sm:$0xff]
    %v103 = vld [vmem:[%s0 + $0x10] sm:$0xff]
    %v104 = vld [vmem:[%s0 + $0x18] sm:$0xf]
    %v105 = vld [vmem:[#allocation2] sm:$0xff]
    %v106 = vld [vmem:[#allocation2 + $0x8] sm:$0xff]
    %v107 = vld [vmem:[#allocation2 + $0x10] sm:$0xff]
    %v108 = vld [vmem:[#allocation2 + $0x18] sm:$0xff]
    %v109 = vld [vmem:[#allocation2 + $0x20] sm:$0xff]
    %v110 = vld [vmem:[#allocation2 + $0x28] sm:$0xff]
    %v111 = vld [vmem:[#allocation2 + $0x30] sm:$0xff]
    %v112 = vld [vmem:[#allocation2 + $0x38] sm:$0xff]
    %v113 = vld [vmem:[#allocation2 + $0x40] sm:$0xff]
    %v114 = vld [vmem:[#allocation2 + $0x48] sm:$0xff]
    %v115 = vld [vmem:[#allocation2 + $0x50] sm:$0xff]
    %v116 = vld [vmem:[#allocation2 + $0x58] sm:$0xff]
    %v117 = vld [vmem:[#allocation2 + $0x60] sm:$0xff]
    %v118 = vld [vmem:[#allocation2 + $0x68] sm:$0xff]
    %v119 = vld [vmem:[#allocation2 + $0x70] sm:$0xff]
    %v120 = vld [vmem:[#allocation2 + $0x78] sm:$0xff]
    %v121 = vld [vmem:[#allocation2 + $0x80] sm:$0xff]
    %v122 = vld [vmem:[#allocation2 + $0x88] sm:$0xff]
    %v123 = vld [vmem:[#allocation2 + $0x90] sm:$0xff]
    %v124 = vld [vmem:[#allocation2 + $0x98] sm:$0xff]
    %v125 = vld [vmem:[#allocation2 + $0xa0] sm:$0xff]
    %v126 = vld [vmem:[#allocation2 + $0xa8] sm:$0xff]
    %v127 = vld [vmem:[#allocation2 + $0xb0] sm:$0xff]
    %v128 = vld [vmem:[#allocation2 + $0xb8] sm:$0xff]
    %v129 = vld [vmem:[#allocation2 + $0xc0] sm:$0xff]
    %v130 = vld [vmem:[#allocation2 + $0xc8] sm:$0xff]
    %v131 = vld [vmem:[#allocation2 + $0xd0] sm:$0xff]
    %v132 = vld [vmem:[#allocation2 + $0xd8] sm:$0xff]
    %v133 = vld [vmem:[#allocation2 + $0xe0] sm:$0xff]
    %v134 = vld [vmem:[#allocation2 + $0xe8] sm:$0xff]
    %v135 = vld [vmem:[#allocation2 + $0xf0] sm:$0xff]
    %v136 = vld [vmem:[#allocation2 + $0xf8] sm:$0xff]
    %v137 = vld [vmem:[#allocation2 + $0x100] sm:$0xff]
    %v138 = vld [vmem:[#allocation2 + $0x108] sm:$0xff]
    %v139 = vld [vmem:[#allocation2 + $0x110] sm:$0xff]
    %v140 = vld [vmem:[#allocation2 + $0x118] sm:$0xff]
    %v141 = vld [vmem:[#allocation2 + $0x120] sm:$0xff]
    %v142 = vld [vmem:[#allocation2 + $0x128] sm:$0xff]
    %v143 = vld [vmem:[#allocation2 + $0x130] sm:$0xff]
    %v144 = vld [vmem:[#allocation2 + $0x138] sm:$0xff]
    %v145 = vld [vmem:[#allocation2 + $0x140] sm:$0xff]
    %v146 = vld [vmem:[#allocation2 + $0x148] sm:$0xff]
    %v147 = vld [vmem:[#allocation2 + $0x150] sm:$0xff]
    %v148 = vld [vmem:[#allocation2 + $0x158] sm:$0xff]
    %v149 = vld [vmem:[#allocation2 + $0x160] sm:$0xff]
    %v150 = vld [vmem:[#allocation2 + $0x168] sm:$0xff]
    %v151 = vld [vmem:[#allocation2 + $0x170] sm:$0xff]
    %v152 = vld [vmem:[#allocation2 + $0x178] sm:$0xff]
    %v153 = vld [vmem:[#allocation2 + $0x180] sm:$0xff]
    %v154 = vld [vmem:[#allocation2 + $0x188] sm:$0xff]
    %v155 = vld [vmem:[#allocation2 + $0x190] sm:$0xff]
    %v156 = vld [vmem:[#allocation2 + $0x198] sm:$0xff]
    %v157 = vld [vmem:[#allocation2 + $0x1a0] sm:$0xff]
    %v158 = vld [vmem:[#allocation2 + $0x1a8] sm:$0xff]
    %v159 = vld [vmem:[#allocation2 + $0x1b0] sm:$0xff]
    %v160 = vld [vmem:[#allocation2 + $0x1b8] sm:$0xff]
    %v161 = vld [vmem:[#allocation2 + $0x1c0] sm:$0xff]
    %v162 = vld [vmem:[#allocation2 + $0x1c8] sm:$0xff]
    %v163 = vld [vmem:[#allocation2 + $0x1d0] sm:$0xff]
    %v164 = vld [vmem:[#allocation2 + $0x1d8] sm:$0xff]
    %v165 = vld [vmem:[#allocation2 + $0x1e0] sm:$0xff]
    %v166 = vld [vmem:[#allocation2 + $0x1e8] sm:$0xff]
    %v167 = vld [vmem:[#allocation2 + $0x1f0] sm:$0xff]
    %v168 = vld [vmem:[#allocation2 + $0x1f8] sm:$0xff]
    %v169 = vld [vmem:[#allocation2 + $0x200] sm:$0xff]
    %v170 = vld [vmem:[#allocation2 + $0x208] sm:$0xff]
    %v171 = vld [vmem:[#allocation2 + $0x210] sm:$0xff]
    %v172 = vld [vmem:[#allocation2 + $0x218] sm:$0xff]
    %v173 = vld [vmem:[#allocation2 + $0x220] sm:$0xff]
    %v174 = vld [vmem:[#allocation2 + $0x228] sm:$0xff]
    %v175 = vld [vmem:[#allocation2 + $0x230] sm:$0xff]
    %v176 = vld [vmem:[#allocation2 + $0x238] sm:$0xff]
    %v177 = vld [vmem:[#allocation2 + $0x240] sm:$0xff]
    %v178 = vld [vmem:[#allocation2 + $0x248] sm:$0xff]
    %v179 = vld [vmem:[#allocation2 + $0x250] sm:$0xff]
    %v180 = vld [vmem:[#allocation2 + $0x258] sm:$0xff]
    %v181 = vld [vmem:[#allocation2 + $0x260] sm:$0xff]
    %v182 = vld [vmem:[#allocation2 + $0x268] sm:$0xff]
    %v183 = vld [vmem:[#allocation2 + $0x270] sm:$0xff]
    %v184 = vld [vmem:[#allocation2 + $0x278] sm:$0xff]
    %v185 = vld [vmem:[#allocation2 + $0x280] sm:$0xff]
    %v186 = vld [vmem:[#allocation2 + $0x288] sm:$0xff]
    %v187 = vld [vmem:[#allocation2 + $0x290] sm:$0xff]
    %v188 = vld [vmem:[#allocation2 + $0x298] sm:$0xff]
    %v189 = vld [vmem:[#allocation2 + $0x2a0] sm:$0xff]
    %v190 = vld [vmem:[#allocation2 + $0x2a8] sm:$0xff]
    %v191 = vld [vmem:[#allocation2 + $0x2b0] sm:$0xff]
    %v192 = vld [vmem:[#allocation2 + $0x2b8] sm:$0xff]
    %v193 = vld [vmem:[#allocation2 + $0x2c0] sm:$0xff]
    %v194 = vld [vmem:[#allocation2 + $0x2c8] sm:$0xff]
    %v195 = vld [vmem:[#allocation2 + $0x2d0] sm:$0xff]
    %v196 = vld [vmem:[#allocation2 + $0x2d8] sm:$0xff]
    %v197 = vld [vmem:[#allocation2 + $0x2e0] sm:$0xff]
    %v198 = vld [vmem:[#allocation2 + $0x2e8] sm:$0xff]
    %v199 = vld [vmem:[#allocation2 + $0x2f0] sm:$0xff]
    %v200 = vld [vmem:[#allocation2 + $0x2f8] sm:$0xff]
    %v201 = vld [vmem:[#allocation2 + $0x300] sm:$0xff]
    %v202 = vld [vmem:[#allocation2 + $0x308] sm:$0xff]
    %v203 = vld [vmem:[#allocation2 + $0x310] sm:$0xff]
    %v204 = vld [vmem:[#allocation2 + $0x318] sm:$0xff]
    %v205 = vld [vmem:[#allocation2 + $0x320] sm:$0xff]
    %v206 = vld [vmem:[#allocation2 + $0x328] sm:$0xff]
    %v207 = vld [vmem:[#allocation2 + $0x330] sm:$0xff]
    %v208 = vld [vmem:[#allocation2 + $0x338] sm:$0xff]
    %v209 = vld [vmem:[#allocation2 + $0x340] sm:$0xff]
    %v210 = vld [vmem:[#allocation2 + $0x348] sm:$0xff]
    %v211 = vld [vmem:[#allocation2 + $0x350] sm:$0xff]
    %v212 = vld [vmem:[#allocation2 + $0x358] sm:$0xff]
    %v213 = vld [vmem:[#allocation2 + $0x360] sm:$0xff]
    %v214 = vld [vmem:[#allocation2 + $0x368] sm:$0xff]
    %v215 = vld [vmem:[#allocation2 + $0x370] sm:$0xff]
    %v216 = vld [vmem:[#allocation2 + $0x378] sm:$0xff]
    %v217 = vld [vmem:[#allocation2 + $0x380] sm:$0xff]
    %v218 = vld [vmem:[#allocation2 + $0x388] sm:$0xff]
    %v219 = vld [vmem:[#allocation2 + $0x390] sm:$0xff]
    %v220 = vld [vmem:[#allocation2 + $0x398] sm:$0xff]
    %v221 = vld [vmem:[#allocation2 + $0x3a0] sm:$0xff]
    %v222 = vld [vmem:[#allocation2 + $0x3a8] sm:$0xff]
    %v223 = vld [vmem:[#allocation2 + $0x3b0] sm:$0xff]
    %v224 = vld [vmem:[#allocation2 + $0x3b8] sm:$0xff]
    %v225 = vld [vmem:[#allocation2 + $0x3c0] sm:$0xff]
    %v226 = vld [vmem:[#allocation2 + $0x3c8] sm:$0xff]
    %v227 = vld [vmem:[#allocation2 + $0x3d0] sm:$0xff]
    %v228 = vld [vmem:[#allocation2 + $0x3d8] sm:$0xff]
    %v229 = vld [vmem:[#allocation2 + $0x3e0] sm:$0xff]
    %v230 = vld [vmem:[#allocation2 + $0x3e8] sm:$0xff]
    %v231 = vld [vmem:[#allocation2 + $0x3f0] sm:$0xff]
    %v232 = vld [vmem:[#allocation2 + $0x3f8] sm:$0xff]
    %v233 = vld [vmem:[#allocation2 + $0x400] sm:$0xff]
    %v234 = vld [vmem:[#allocation2 + $0x408] sm:$0xff]
    %v235 = vld [vmem:[#allocation2 + $0x410] sm:$0xff]
    %v236 = vld [vmem:[#allocation2 + $0x418] sm:$0xff]
    %v237 = vld [vmem:[#allocation2 + $0x420] sm:$0xff]
    %v238 = vld [vmem:[#allocation2 + $0x428] sm:$0xff]
    %v239 = vld [vmem:[#allocation2 + $0x430] sm:$0xff]
    %v240 = vld [vmem:[#allocation2 + $0x438] sm:$0xff]
    %v241 = vld [vmem:[#allocation2 + $0x440] sm:$0xff]
    %v242 = vld [vmem:[#allocation2 + $0x448] sm:$0xff]
    %v243 = vld [vmem:[#allocation2 + $0x450] sm:$0xff]
    %v244 = vld [vmem:[#allocation2 + $0x458] sm:$0xff]
    %v245 = vld [vmem:[#allocation2 + $0x460] sm:$0xff]
    %v246 = vld [vmem:[#allocation2 + $0x468] sm:$0xff]
    %v247 = vld [vmem:[#allocation2 + $0x470] sm:$0xff]
    %v248 = vld [vmem:[#allocation2 + $0x478] sm:$0xff]
    %v249 = vld [vmem:[#allocation2 + $0x480] sm:$0xff]
    %v250 = vld [vmem:[#allocation2 + $0x488] sm:$0xff]
    %v251 = vld [vmem:[#allocation2 + $0x490] sm:$0xff]
    %v252 = vld [vmem:[#allocation2 + $0x498] sm:$0xff]
    %v253 = vld [vmem:[#allocation2 + $0x4a0] sm:$0xff]
    %v254 = vld [vmem:[#allocation2 + $0x4a8] sm:$0xff]
    %v255 = vld [vmem:[#allocation2 + $0x4b0] sm:$0xff]
    %v256 = vld [vmem:[#allocation2 + $0x4b8] sm:$0xff]
    %v257 = vld [vmem:[#allocation2 + $0x4c0] sm:$0xff]
    %v258 = vld [vmem:[#allocation2 + $0x4c8] sm:$0xff]
    %v259 = vld [vmem:[#allocation2 + $0x4d0] sm:$0xff]
    %v260 = vld [vmem:[#allocation2 + $0x4d8] sm:$0xff]
    %v261 = vld [vmem:[#allocation2 + $0x4e0] sm:$0xff]
    %v262 = vld [vmem:[#allocation2 + $0x4e8] sm:$0xff]
    %v263 = vld [vmem:[#allocation2 + $0x4f0] sm:$0xff]
    %v264 = vld [vmem:[#allocation2 + $0x4f8] sm:$0xff]
    %v265 = vld [vmem:[#allocation2 + $0x500] sm:$0xff]
    %v266 = vld [vmem:[#allocation2 + $0x508] sm:$0xff]
    %v267 = vld [vmem:[#allocation2 + $0x510] sm:$0xff]
    %v268 = vld [vmem:[#allocation2 + $0x518] sm:$0xff]
    %v269 = vld [vmem:[#allocation2 + $0x520] sm:$0xff]
    %v270 = vld [vmem:[#allocation2 + $0x528] sm:$0xff]
    %v271 = vld [vmem:[#allocation2 + $0x530] sm:$0xff]
    %v272 = vld [vmem:[#allocation2 + $0x538] sm:$0xff]
    %v273 = vld [vmem:[#allocation2 + $0x540] sm:$0xff]
    %v274 = vld [vmem:[#allocation2 + $0x548] sm:$0xff]
    %v275 = vld [vmem:[#allocation2 + $0x550] sm:$0xff]
    %v276 = vld [vmem:[#allocation2 + $0x558] sm:$0xff]
    %v277 = vld [vmem:[#allocation2 + $0x560] sm:$0xff]
    %v278 = vld [vmem:[#allocation2 + $0x568] sm:$0xff]
    %v279 = vld [vmem:[#allocation2 + $0x570] sm:$0xff]
    %v280 = vld [vmem:[#allocation2 + $0x578] sm:$0xff]
    %v281 = vld [vmem:[#allocation2 + $0x580] sm:$0xff]
    %v282 = vld [vmem:[#allocation2 + $0x588] sm:$0xff]
    %v283 = vld [vmem:[#allocation2 + $0x590] sm:$0xff]
    %v284 = vld [vmem:[#allocation2 + $0x598] sm:$0xff]
    %v285 = vld [vmem:[#allocation2 + $0x5a0] sm:$0xff]
    %v286 = vld [vmem:[#allocation2 + $0x5a8] sm:$0xff]
    %v287 = vld [vmem:[#allocation2 + $0x5b0] sm:$0xff]
    %v288 = vld [vmem:[#allocation2 + $0x5b8] sm:$0xff]
    %v289 = vld [vmem:[#allocation2 + $0x5c0] sm:$0xff]
    %v290 = vld [vmem:[#allocation2 + $0x5c8] sm:$0xff]
    %v291 = vld [vmem:[#allocation2 + $0x5d0] sm:$0xff]
    %v292 = vld [vmem:[#allocation2 + $0x5d8] sm:$0xff]
    %v293 = vld [vmem:[#allocation2 + $0x5e0] sm:$0xff]
    %v294 = vld [vmem:[#allocation2 + $0x5e8] sm:$0xff]
    %v295 = vld [vmem:[#allocation2 + $0x5f0] sm:$0xff]
    %v296 = vld [vmem:[#allocation2 + $0x5f8] sm:$0xff]
    %v297 = vld [vmem:[#allocation2 + $0x600] sm:$0xff]
    %v298 = vld [vmem:[#allocation2 + $0x608] sm:$0xff]
    %v299 = vld [vmem:[#allocation2 + $0x610] sm:$0xff]
    %v300 = vld [vmem:[#allocation2 + $0x618] sm:$0xff]
    %v301 = vld [vmem:[#allocation2 + $0x620] sm:$0xff]
    %v302 = vld [vmem:[#allocation2 + $0x628] sm:$0xff]
    %v303 = vld [vmem:[#allocation2 + $0x630] sm:$0xff]
    %v304 = vld [vmem:[#allocation2 + $0x638] sm:$0xff]
    %v305 = vld [vmem:[#allocation2 + $0x640] sm:$0xff]
    %v306 = vld [vmem:[#allocation2 + $0x648] sm:$0xff]
    %v307 = vld [vmem:[#allocation2 + $0x650] sm:$0xff]
    %v308 = vld [vmem:[#allocation2 + $0x658] sm:$0xff]
    %v309 = vld [vmem:[#allocation2 + $0x660] sm:$0xff]
    %v310 = vld [vmem:[#allocation2 + $0x668] sm:$0xff]
    %v311 = vld [vmem:[#allocation2 + $0x670] sm:$0xff]
    %v312 = vld [vmem:[#allocation2 + $0x678] sm:$0xff]
    %v313 = vld [vmem:[#allocation2 + $0x680] sm:$0xff]
    %v314 = vld [vmem:[#allocation2 + $0x688] sm:$0xff]
    %v315 = vld [vmem:[#allocation2 + $0x690] sm:$0xff]
    %v316 = vld [vmem:[#allocation2 + $0x698] sm:$0xff]
    %v317 = vld [vmem:[#allocation2 + $0x6a0] sm:$0xff]
    %v318 = vld [vmem:[#allocation2 + $0x6a8] sm:$0xff]
    %v319 = vld [vmem:[#allocation2 + $0x6b0] sm:$0xff]
    %v320 = vld [vmem:[#allocation2 + $0x6b8] sm:$0xff]
    %v321 = vld [vmem:[#allocation2 + $0x6c0] sm:$0xff]
    %v322 = vld [vmem:[#allocation2 + $0x6c8] sm:$0xff]
    %v323 = vld [vmem:[#allocation2 + $0x6d0] sm:$0xff]
    %v324 = vld [vmem:[#allocation2 + $0x6d8] sm:$0xff]
    %v325 = vld [vmem:[#allocation2 + $0x6e0] sm:$0xff]
    %v326 = vld [vmem:[#allocation2 + $0x6e8] sm:$0xff]
    %v327 = vld [vmem:[#allocation2 + $0x6f0] sm:$0xff]
    %v328 = vld [vmem:[#allocation2 + $0x6f8] sm:$0xff]
    %v329 = vld [vmem:[#allocation2 + $0x700] sm:$0xff]
    %v330 = vld [vmem:[#allocation2 + $0x708] sm:$0xff]
    %v331 = vld [vmem:[#allocation2 + $0x710] sm:$0xff]
    %v332 = vld [vmem:[#allocation2 + $0x718] sm:$0xff]
    %v333 = vld [vmem:[#allocation2 + $0x720] sm:$0xff]
    %v334 = vld [vmem:[#allocation2 + $0x728] sm:$0xff]
    %v335 = vld [vmem:[#allocation2 + $0x730] sm:$0xff]
    %v336 = vld [vmem:[#allocation2 + $0x738] sm:$0xff]
    %v337 = vld [vmem:[#allocation2 + $0x740] sm:$0xff]
    %v338 = vld [vmem:[#allocation2 + $0x748] sm:$0xff]
    %v339 = vld [vmem:[#allocation2 + $0x750] sm:$0xff]
    %v340 = vld [vmem:[#allocation2 + $0x758] sm:$0xff]
    %v341 = vld [vmem:[#allocation2 + $0x760] sm:$0xff]
    %v342 = vld [vmem:[#allocation2 + $0x768] sm:$0xff]
    %v343 = vld [vmem:[#allocation2 + $0x770] sm:$0xff]
    %v344 = vld [vmem:[#allocation2 + $0x778] sm:$0xff]
    %v345 = vld [vmem:[#allocation2 + $0x780] sm:$0xff]
    %v346 = vld [vmem:[#allocation2 + $0x788] sm:$0xff]
    %v347 = vld [vmem:[#allocation2 + $0x790] sm:$0xff]
    %v348 = vld [vmem:[#allocation2 + $0x798] sm:$0xff]
    %v349 = vld [vmem:[#allocation2 + $0x7a0] sm:$0xff]
    %v350 = vld [vmem:[#allocation2 + $0x7a8] sm:$0xff]
    %v351 = vld [vmem:[#allocation2 + $0x7b0] sm:$0xff]
    %v352 = vld [vmem:[#allocation2 + $0x7b8] sm:$0xff]
    %v353 = vld [vmem:[#allocation2 + $0x7c0] sm:$0xff]
    %v354 = vld [vmem:[#allocation2 + $0x7c8] sm:$0xff]
    %v355 = vld [vmem:[#allocation2 + $0x7d0] sm:$0xff]
    %v356 = vld [vmem:[#allocation2 + $0x7d8] sm:$0xff]
    %v357 = vld [vmem:[#allocation2 + $0x7e0] sm:$0xff]
    %v358 = vld [vmem:[#allocation2 + $0x7e8] sm:$0xff]
    %v359 = vld [vmem:[#allocation2 + $0x7f0] sm:$0xff]
    %v360 = vld [vmem:[#allocation2 + $0x7f8] sm:$0xff]
    %v361 = vld [vmem:[#allocation2 + $0x800] sm:$0xff]
    %v362 = vld [vmem:[#allocation2 + $0x808] sm:$0xff]
    %v363 = vld [vmem:[#allocation2 + $0x810] sm:$0xff]
    %v364 = vld [vmem:[#allocation2 + $0x818] sm:$0xff]
    %v365 = vld [vmem:[#allocation2 + $0x820] sm:$0xff]
    %v366 = vld [vmem:[#allocation2 + $0x828] sm:$0xff]
    %v367 = vld [vmem:[#allocation2 + $0x830] sm:$0xff]
    %v368 = vld [vmem:[#allocation2 + $0x838] sm:$0xff]
    %v369 = vld [vmem:[#allocation2 + $0x840] sm:$0xff]
    %v370 = vld [vmem:[#allocation2 + $0x848] sm:$0xff]
    %v371 = vld [vmem:[#allocation2 + $0x850] sm:$0xff]
    %v372 = vld [vmem:[#allocation2 + $0x858] sm:$0xff]
    %v373 = vld [vmem:[#allocation2 + $0x860] sm:$0xff]
    %v374 = vld [vmem:[#allocation2 + $0x868] sm:$0xff]
    %v375 = vld [vmem:[#allocation2 + $0x870] sm:$0xff]
    %v376 = vld [vmem:[#allocation2 + $0x878] sm:$0xff]
    %v377 = vld [vmem:[#allocation2 + $0x880] sm:$0xff]
    %v378 = vld [vmem:[#allocation2 + $0x888] sm:$0xff]
    %v379 = vld [vmem:[#allocation2 + $0x890] sm:$0xff]
    %v380 = vld [vmem:[#allocation2 + $0x898] sm:$0xff]
    %v381 = vld [vmem:[#allocation2 + $0x8a0] sm:$0xff]
    %v382 = vld [vmem:[#allocation2 + $0x8a8] sm:$0xff]
    %v383 = vld [vmem:[#allocation2 + $0x8b0] sm:$0xff]
    %v384 = vld [vmem:[#allocation2 + $0x8b8] sm:$0xff]
    %v385 = vld [vmem:[#allocation2 + $0x8c0] sm:$0xff]
    %v386 = vld [vmem:[#allocation2 + $0x8c8] sm:$0xff]
    %v387 = vld [vmem:[#allocation2 + $0x8d0] sm:$0xff]
    %v388 = vld [vmem:[#allocation2 + $0x8d8] sm:$0xff]
    %v389 = vld [vmem:[#allocation2 + $0x8e0] sm:$0xff]
    %v390 = vld [vmem:[#allocation2 + $0x8e8] sm:$0xff]
    %v391 = vld [vmem:[#allocation2 + $0x8f0] sm:$0xff]
    %v392 = vld [vmem:[#allocation2 + $0x8f8] sm:$0xff]
    %v393 = vld [vmem:[#allocation2 + $0x900] sm:$0xff]
    %v394 = vld [vmem:[#allocation2 + $0x908] sm:$0xff]
    %v395 = vld [vmem:[#allocation2 + $0x910] sm:$0xff]
    %v396 = vld [vmem:[#allocation2 + $0x918] sm:$0xff]
    %v397 = vld [vmem:[#allocation2 + $0x920] sm:$0xff]
    %v398 = vld [vmem:[#allocation2 + $0x928] sm:$0xff]
    %v399 = vld [vmem:[#allocation2 + $0x930] sm:$0xff]
    %v400 = vld [vmem:[#allocation2 + $0x938] sm:$0xff]
    %v401 = vld [vmem:[#allocation2 + $0x940] sm:$0xff]
    %v402 = vld [vmem:[#allocation2 + $0x948] sm:$0xff]
    %v403 = vld [vmem:[#allocation2 + $0x950] sm:$0xff]
    %v404 = vld [vmem:[#allocation2 + $0x958] sm:$0xff]
    %v405 = vld [vmem:[#allocation2 + $0x960] sm:$0xff]
    %v406 = vld [vmem:[#allocation2 + $0x968] sm:$0xff]
    %v407 = vld [vmem:[#allocation2 + $0x970] sm:$0xff]
    %v408 = vld [vmem:[#allocation2 + $0x978] sm:$0xff]
    %v409 = vld [vmem:[#allocation2 + $0x980] sm:$0xff]
    %v410 = vld [vmem:[#allocation2 + $0x988] sm:$0xff]
    %v411 = vld [vmem:[#allocation2 + $0x990] sm:$0xff]
    %v412 = vld [vmem:[#allocation2 + $0x998] sm:$0xff]
    %v413 = vld [vmem:[#allocation2 + $0x9a0] sm:$0xff]
    %v414 = vld [vmem:[#allocation2 + $0x9a8] sm:$0xff]
    %v415 = vld [vmem:[#allocation2 + $0x9b0] sm:$0xff]
    %v416 = vld [vmem:[#allocation2 + $0x9b8] sm:$0xff]
    %v417 = vld [vmem:[#allocation2 + $0x9c0] sm:$0xff]
    %v418 = vld [vmem:[#allocation2 + $0x9c8] sm:$0xff]
    %v419 = vld [vmem:[#allocation2 + $0x9d0] sm:$0xff]
    %v420 = vld [vmem:[#allocation2 + $0x9d8] sm:$0xff]
    %v421 = vld [vmem:[#allocation2 + $0x9e0] sm:$0xff]
    %v422 = vld [vmem:[#allocation2 + $0x9e8] sm:$0xff]
    %v423 = vld [vmem:[#allocation2 + $0x9f0] sm:$0xff]
    %v424 = vld [vmem:[#allocation2 + $0x9f8] sm:$0xff]
    %v425 = vld [vmem:[#allocation2 + $0xa00] sm:$0xff]
    %v426 = vld [vmem:[#allocation2 + $0xa08] sm:$0xff]
    %v427 = vld [vmem:[#allocation2 + $0xa10] sm:$0xff]
    %v428 = vld [vmem:[#allocation2 + $0xa18] sm:$0xff]
    %v429 = vld [vmem:[#allocation2 + $0xa20] sm:$0xff]
    %v430 = vld [vmem:[#allocation2 + $0xa28] sm:$0xff]
    %v431 = vld [vmem:[#allocation2 + $0xa30] sm:$0xff]
    %v432 = vld [vmem:[#allocation2 + $0xa38] sm:$0xff]
    %v433 = vld [vmem:[#allocation2 + $0xa40] sm:$0xff]
    %v434 = vld [vmem:[#allocation2 + $0xa48] sm:$0xff]
    %v435 = vld [vmem:[#allocation2 + $0xa50] sm:$0xff]
    %v436 = vld [vmem:[#allocation2 + $0xa58] sm:$0xff]
    %v437 = vld [vmem:[#allocation2 + $0xa60] sm:$0xff]
    %v438 = vld [vmem:[#allocation2 + $0xa68] sm:$0xff]
    %v439 = vld [vmem:[#allocation2 + $0xa70] sm:$0xff]
    %v440 = vld [vmem:[#allocation2 + $0xa78] sm:$0xff]
    %v441 = vld [vmem:[#allocation2 + $0xa80] sm:$0xff]
    %v442 = vld [vmem:[#allocation2 + $0xa88] sm:$0xff]
    %v443 = vld [vmem:[#allocation2 + $0xa90] sm:$0xff]
    %v444 = vld [vmem:[#allocation2 + $0xa98] sm:$0xff]
    %v445 = vld [vmem:[#allocation2 + $0xaa0] sm:$0xff]
    %v446 = vld [vmem:[#allocation2 + $0xaa8] sm:$0xff]
    %v447 = vld [vmem:[#allocation2 + $0xab0] sm:$0xff]
    %v448 = vld [vmem:[#allocation2 + $0xab8] sm:$0xff]
    %v449 = vld [vmem:[#allocation2 + $0xac0] sm:$0xff]
    %v450 = vld [vmem:[#allocation2 + $0xac8] sm:$0xff]
    %v451 = vld [vmem:[#allocation2 + $0xad0] sm:$0xff]
    %v452 = vld [vmem:[#allocation2 + $0xad8] sm:$0xff]
    %v453 = vld [vmem:[#allocation2 + $0xae0] sm:$0xff]
    %v454 = vld [vmem:[#allocation2 + $0xae8] sm:$0xff]
    %v455 = vld [vmem:[#allocation2 + $0xaf0] sm:$0xff]
    %v456 = vld [vmem:[#allocation2 + $0xaf8] sm:$0xff]
    %v457 = vld [vmem:[#allocation2 + $0xb00] sm:$0xff]
    %v458 = vld [vmem:[#allocation2 + $0xb08] sm:$0xff]
    %v459 = vld [vmem:[#allocation2 + $0xb10] sm:$0xff]
    %v460 = vld [vmem:[#allocation2 + $0xb18] sm:$0xff]
    %v461 = vld [vmem:[#allocation2 + $0xb20] sm:$0xff]
    %v462 = vld [vmem:[#allocation2 + $0xb28] sm:$0xff]
    %v463 = vld [vmem:[#allocation2 + $0xb30] sm:$0xff]
    %v464 = vld [vmem:[#allocation2 + $0xb38] sm:$0xff]
    %v465 = vld [vmem:[#allocation2 + $0xb40] sm:$0xff]
    %v466 = vld [vmem:[#allocation2 + $0xb48] sm:$0xff]
    %v467 = vld [vmem:[#allocation2 + $0xb50] sm:$0xff]
    %v468 = vld [vmem:[#allocation2 + $0xb58] sm:$0xff]
    %v469 = vld [vmem:[#allocation2 + $0xb60] sm:$0xff]
    %v470 = vld [vmem:[#allocation2 + $0xb68] sm:$0xff]
    %v471 = vld [vmem:[#allocation2 + $0xb70] sm:$0xff]
    %v472 = vld [vmem:[#allocation2 + $0xb78] sm:$0xff]
    %v473 = vld [vmem:[#allocation2 + $0xb80] sm:$0xff]
    %v474 = vld [vmem:[#allocation2 + $0xb88] sm:$0xff]
    %v475 = vld [vmem:[#allocation2 + $0xb90] sm:$0xff]
    %v476 = vld [vmem:[#allocation2 + $0xb98] sm:$0xff]
    %v477 = vld [vmem:[#allocation2 + $0xba0] sm:$0xff]
    %v478 = vld [vmem:[#allocation2 + $0xba8] sm:$0xff]
    %v479 = vld [vmem:[#allocation2 + $0xbb0] sm:$0xff]
    %v480 = vld [vmem:[#allocation2 + $0xbb8] sm:$0xff]
    %v481 = vld [vmem:[#allocation2 + $0xbc0] sm:$0xff]
    %v482 = vld [vmem:[#allocation2 + $0xbc8] sm:$0xff]
    %v483 = vld [vmem:[#allocation2 + $0xbd0] sm:$0xff]
    %v484 = vld [vmem:[#allocation2 + $0xbd8] sm:$0xff]
    %v485 = vld [vmem:[#allocation2 + $0xbe0] sm:$0xff]
    %v486 = vld [vmem:[#allocation2 + $0xbe8] sm:$0xff]
    %v487 = vld [vmem:[#allocation2 + $0xbf0] sm:$0xff]
    %v488 = vld [vmem:[#allocation2 + $0xbf8] sm:$0xff]
    %v489 = vld [vmem:[#allocation2 + $0xc00] sm:$0xff]
    %v490 = vld [vmem:[#allocation2 + $0xc08] sm:$0xff]
    %v491 = vld [vmem:[#allocation2 + $0xc10] sm:$0xff]
    %v492 = vld [vmem:[#allocation2 + $0xc18] sm:$0xff]
    %v493 = vld [vmem:[#allocation2 + $0xc20] sm:$0xff]
    %v494 = vld [vmem:[#allocation2 + $0xc28] sm:$0xff]
    %v495 = vld [vmem:[#allocation2 + $0xc30] sm:$0xff]
    %v496 = vld [vmem:[#allocation2 + $0xc38] sm:$0xff]
    %v497 = vld [vmem:[#allocation5] sm:$0xf]
    %v499 = vlaneseq
    %v500 = vshrl.u32 %v499, 7
    %v501 = vsub.s32 0, %v500
    %v502 = vrot.slane %v497, %v501
    %v503 = vlaneseq
    %v504 = vshrl.u32 %v503, 7
    %v505 = vsub.s32 1, %v504
    %v506 = vrot.slane %v497, %v505
    %v507 = vlaneseq
    %v508 = vshrl.u32 %v507, 7
    %v509 = vsub.s32 2, %v508
    %v510 = vrot.slane %v497, %v509
    %v511 = vlaneseq
    %v512 = vshrl.u32 %v511, 7
    %v513 = vsub.s32 3, %v512
    %v514 = vrot.slane %v497, %v513
    %v523 = vcombine.high %v101, %v101
    %v524 = vcombine.high %v102, %v102
    %v525 = vcombine.high %v103, %v103
    %vm529 = vcmask 130048
    %v530 = vsel %vm529, %v104, 0
    %532 = vmatprep.subr.mxu0 %v166
    %533 = vmatpush1.msra.mxu0 %v165
    %534 = vmatprep.subr.mxu0 %v162
    %535 = vmatpush1.msra.mxu0 %v161
    %536 = vmatprep.subr.mxu0 %v158
    %537 = vmatpush1.msra.mxu0 %v157
    %538 = vmatprep.subr.mxu0 %v154
    %539 = vmatpush1.msra.mxu0 %v153
    %540 = vmatprep.subr.mxu0 %v150
    %541 = vmatpush1.msra.mxu0 %v149
    %542 = vmatprep.subr.mxu0 %v146
    %543 = vmatpush1.msra.mxu0 %v145
    %544 = vmatprep.subr.mxu0 %v142
    %545 = vmatpush1.msra.mxu0 %v141
    %546 = vmatprep.subr.mxu0 %v138
    %547 = vmatpush1.msra.mxu0 %v137
    %548 = vmatprep.subr.mxu0 %v134
    %549 = vmatpush1.msra.mxu0 %v133
    %550 = vmatprep.subr.mxu0 %v130
    %551 = vmatpush1.msra.mxu0 %v129
    %552 = vmatprep.subr.mxu0 %v126
    %553 = vmatpush1.msra.mxu0 %v125
    %554 = vmatprep.subr.mxu0 %v122
    %555 = vmatpush1.msra.mxu0 %v121
    %556 = vmatprep.subr.mxu0 %v118
    %557 = vmatpush1.msra.mxu0 %v117
    %558 = vmatprep.subr.mxu0 %v114
    %559 = vmatpush1.msra.mxu0 %v113
    %560 = vmatprep.subr.mxu0 %v110
    %561 = vmatpush1.msra.mxu0 %v109
    %562 = vmatprep.subr.mxu0 %v106
    %563 = vmatpush1.msra.mxu0 %v105
    %564 = vmatprep.subr.mxu0 %v230
    %565 = vmatpush2.msra.mxu0 %v229
    %566 = vmatprep.subr.mxu0 %v226
    %567 = vmatpush2.msra.mxu0 %v225
    %568 = vmatprep.subr.mxu0 %v222
    %569 = vmatpush2.msra.mxu0 %v221
    %570 = vmatprep.subr.mxu0 %v218
    %571 = vmatpush2.msra.mxu0 %v217
    %572 = vmatprep.subr.mxu0 %v214
    %573 = vmatpush2.msra.mxu0 %v213
    %574 = vmatprep.subr.mxu0 %v210
    %575 = vmatpush2.msra.mxu0 %v209
    %576 = vmatprep.subr.mxu0 %v206
    %577 = vmatpush2.msra.mxu0 %v205
    %578 = vmatprep.subr.mxu0 %v202
    %579 = vmatpush2.msra.mxu0 %v201
    %580 = vmatprep.subr.mxu0 %v198
    %581 = vmatpush2.msra.mxu0 %v197
    %582 = vmatprep.subr.mxu0 %v194
    %583 = vmatpush2.msra.mxu0 %v193
    %584 = vmatprep.subr.mxu0 %v190
    %585 = vmatpush2.msra.mxu0 %v189
    %586 = vmatprep.subr.mxu0 %v186
    %587 = vmatpush2.msra.mxu0 %v185
    %588 = vmatprep.subr.mxu0 %v182
    %589 = vmatpush2.msra.mxu0 %v181
    %590 = vmatprep.subr.mxu0 %v178
    %591 = vmatpush2.msra.mxu0 %v177
    %592 = vmatprep.subr.mxu0 %v174
    %593 = vmatpush2.msra.mxu0 %v173
    %594 = vmatprep.subr.mxu0 %v170
    %595 = vmatpush2.msra.mxu0 %v169
    %596 = vmatprep.mubr.f32.mxu0 %v523
    %597 = vmatmul.mubr.f32.gmra.mxu0 %v101
    %v598 = vpop.f32.mrf.mxu0
    %v599 = vadd.f32 %v502, %v598
    %v600 = vpop.f32.mrf.mxu0
    %v601 = vadd.f32 %v506, %v600
    %602 = vdwg.mxu0
    %603 = vmatprep.subr.mxu0 %v294
    %604 = vmatpush1.msra.mxu0 %v293
    %605 = vmatprep.subr.mxu0 %v290
    %606 = vmatpush1.msra.mxu0 %v289
    %607 = vmatprep.subr.mxu0 %v286
    %608 = vmatpush1.msra.mxu0 %v285
    %609 = vmatprep.subr.mxu0 %v282
    %610 = vmatpush1.msra.mxu0 %v281
    %611 = vmatprep.subr.mxu0 %v278
    %612 = vmatpush1.msra.mxu0 %v277
    %613 = vmatprep.subr.mxu0 %v274
    %614 = vmatpush1.msra.mxu0 %v273
    %615 = vmatprep.subr.mxu0 %v270
    %616 = vmatpush1.msra.mxu0 %v269
    %617 = vmatprep.subr.mxu0 %v266
    %618 = vmatpush1.msra.mxu0 %v265
    %619 = vmatprep.subr.mxu0 %v262
    %620 = vmatpush1.msra.mxu0 %v261
    %621 = vmatprep.subr.mxu0 %v258
    %622 = vmatpush1.msra.mxu0 %v257
    %623 = vmatprep.subr.mxu0 %v254
    %624 = vmatpush1.msra.mxu0 %v253
    %625 = vmatprep.subr.mxu0 %v250
    %626 = vmatpush1.msra.mxu0 %v249
    %627 = vmatprep.subr.mxu0 %v246
    %628 = vmatpush1.msra.mxu0 %v245
    %629 = vmatprep.subr.mxu0 %v242
    %630 = vmatpush1.msra.mxu0 %v241
    %631 = vmatprep.subr.mxu0 %v238
    %632 = vmatpush1.msra.mxu0 %v237
    %633 = vmatprep.subr.mxu0 %v234
    %634 = vmatpush1.msra.mxu0 %v233
    %635 = vmatprep.subr.mxu0 %v358
    %636 = vmatpush2.msra.mxu0 %v357
    %637 = vmatprep.subr.mxu0 %v354
    %638 = vmatpush2.msra.mxu0 %v353
    %639 = vmatprep.subr.mxu0 %v350
    %640 = vmatpush2.msra.mxu0 %v349
    %641 = vmatprep.subr.mxu0 %v346
    %642 = vmatpush2.msra.mxu0 %v345
    %643 = vmatprep.subr.mxu0 %v342
    %644 = vmatpush2.msra.mxu0 %v341
    %645 = vmatprep.subr.mxu0 %v338
    %646 = vmatpush2.msra.mxu0 %v337
    %647 = vmatprep.subr.mxu0 %v334
    %648 = vmatpush2.msra.mxu0 %v333
    %649 = vmatprep.subr.mxu0 %v330
    %650 = vmatpush2.msra.mxu0 %v329
    %651 = vmatprep.subr.mxu0 %v326
    %652 = vmatpush2.msra.mxu0 %v325
    %653 = vmatprep.subr.mxu0 %v322
    %654 = vmatpush2.msra.mxu0 %v321
    %655 = vmatprep.subr.mxu0 %v318
    %656 = vmatpush2.msra.mxu0 %v317
    %657 = vmatprep.subr.mxu0 %v314
    %658 = vmatpush2.msra.mxu0 %v313
    %659 = vmatprep.subr.mxu0 %v310
    %660 = vmatpush2.msra.mxu0 %v309
    %661 = vmatprep.subr.mxu0 %v306
    %662 = vmatpush2.msra.mxu0 %v305
    %663 = vmatprep.subr.mxu0 %v302
    %664 = vmatpush2.msra.mxu0 %v301
    %665 = vmatprep.subr.mxu0 %v298
    %666 = vmatpush2.msra.mxu0 %v297
    %667 = vmatprep.mubr.f32.mxu0 %v524
    %668 = vmatmul.mubr.f32.gmra.mxu0 %v102
    %v669 = vpop.f32.mrf.mxu0
    %v670 = vadd.f32 %v599, %v669
    %v671 = vpop.f32.mrf.mxu0
    %v672 = vadd.f32 %v601, %v671
    %673 = vdwg.mxu0
    %674 = vmatprep.subr.mxu0 %v422
    %675 = vmatpush1.msra.mxu0 %v421
    %676 = vmatprep.subr.mxu0 %v418
    %677 = vmatpush1.msra.mxu0 %v417
    %678 = vmatprep.subr.mxu0 %v414
    %679 = vmatpush1.msra.mxu0 %v413
    %680 = vmatprep.subr.mxu0 %v410
    %681 = vmatpush1.msra.mxu0 %v409
    %682 = vmatprep.subr.mxu0 %v406
    %683 = vmatpush1.msra.mxu0 %v405
    %684 = vmatprep.subr.mxu0 %v402
    %685 = vmatpush1.msra.mxu0 %v401
    %686 = vmatprep.subr.mxu0 %v398
    %687 = vmatpush1.msra.mxu0 %v397
    %688 = vmatprep.subr.mxu0 %v394
    %689 = vmatpush1.msra.mxu0 %v393
    %690 = vmatprep.subr.mxu0 %v390
    %691 = vmatpush1.msra.mxu0 %v389
    %692 = vmatprep.subr.mxu0 %v386
    %693 = vmatpush1.msra.mxu0 %v385
    %694 = vmatprep.subr.mxu0 %v382
    %695 = vmatpush1.msra.mxu0 %v381
    %696 = vmatprep.subr.mxu0 %v378
    %697 = vmatpush1.msra.mxu0 %v377
    %698 = vmatprep.subr.mxu0 %v374
    %699 = vmatpush1.msra.mxu0 %v373
    %700 = vmatprep.subr.mxu0 %v370
    %701 = vmatpush1.msra.mxu0 %v369
    %702 = vmatprep.subr.mxu0 %v366
    %703 = vmatpush1.msra.mxu0 %v365
    %704 = vmatprep.subr.mxu0 %v362
    %705 = vmatpush1.msra.mxu0 %v361
    %706 = vmatprep.subr.mxu0 %v486
    %707 = vmatpush2.msra.mxu0 %v485
    %708 = vmatprep.subr.mxu0 %v482
    %709 = vmatpush2.msra.mxu0 %v481
    %710 = vmatprep.subr.mxu0 %v478
    %711 = vmatpush2.msra.mxu0 %v477
    %712 = vmatprep.subr.mxu0 %v474
    %713 = vmatpush2.msra.mxu0 %v473
    %714 = vmatprep.subr.mxu0 %v470
    %715 = vmatpush2.msra.mxu0 %v469
    %716 = vmatprep.subr.mxu0 %v466
    %717 = vmatpush2.msra.mxu0 %v465
    %718 = vmatprep.subr.mxu0 %v462
    %719 = vmatpush2.msra.mxu0 %v461
    %720 = vmatprep.subr.mxu0 %v458
    %721 = vmatpush2.msra.mxu0 %v457
    %722 = vmatprep.subr.mxu0 %v454
    %723 = vmatpush2.msra.mxu0 %v453
    %724 = vmatprep.subr.mxu0 %v450
    %725 = vmatpush2.msra.mxu0 %v449
    %726 = vmatprep.subr.mxu0 %v446
    %727 = vmatpush2.msra.mxu0 %v445
    %728 = vmatprep.subr.mxu0 %v442
    %729 = vmatpush2.msra.mxu0 %v441
    %730 = vmatprep.subr.mxu0 %v438
    %731 = vmatpush2.msra.mxu0 %v437
    %732 = vmatprep.subr.mxu0 %v434
    %733 = vmatpush2.msra.mxu0 %v433
    %734 = vmatprep.subr.mxu0 %v430
    %735 = vmatpush2.msra.mxu0 %v429
    %736 = vmatprep.subr.mxu0 %v426
    %737 = vmatpush2.msra.mxu0 %v425
    %738 = vmatprep.mubr.f32.mxu0 %v525
    %739 = vmatmul.mubr.f32.gmra.mxu0 %v103
    %v740 = vpop.f32.mrf.mxu0
    %v741 = vadd.f32 %v670, %v740
    %v742 = vpop.f32.mrf.mxu0
    %v743 = vadd.f32 %v672, %v742
    %744 = vdwg.mxu0
    %745 = vmatprep.subr.mxu0 0.0
    %746 = vmatpush1.msra.mxu0 0.0
    %747 = vmatprep.subr.mxu0 0.0
    %748 = vmatpush1.msra.mxu0 0.0
    %749 = vmatprep.subr.mxu0 0.0
    %750 = vmatpush1.msra.mxu0 0.0
    %751 = vmatprep.subr.mxu0 0.0
    %752 = vmatpush1.msra.mxu0 0.0
    %753 = vmatprep.subr.mxu0 0.0
    %754 = vmatpush1.msra.mxu0 0.0
    %755 = vmatprep.subr.mxu0 0.0
    %756 = vmatpush1.msra.mxu0 0.0
    %757 = vmatprep.subr.mxu0 0.0
    %758 = vmatpush1.msra.mxu0 0.0
    %759 = vmatprep.subr.mxu0 0.0
    %760 = vmatpush1.msra.mxu0 0.0
    %761 = vmatprep.subr.mxu0 0.0
    %762 = vmatpush1.msra.mxu0 0.0
    %763 = vmatprep.subr.mxu0 0.0
    %764 = vmatpush1.msra.mxu0 0.0
    %765 = vmatprep.subr.mxu0 0.0
    %766 = vmatpush1.msra.mxu0 0.0
    %767 = vmatprep.subr.mxu0 0.0
    %768 = vmatpush1.msra.mxu0 0.0
    %769 = vmatprep.subr.mxu0 0.0
    %770 = vmatpush1.msra.mxu0 0.0
    %771 = vmatprep.subr.mxu0 0.0
    %772 = vmatpush1.msra.mxu0 0.0
    %773 = vmatprep.subr.mxu0 %v494
    %774 = vmatpush1.msra.mxu0 %v493
    %775 = vmatprep.subr.mxu0 %v490
    %776 = vmatpush1.msra.mxu0 %v489
    %777 = vmatprep.subr.mxu0 0.0
    %778 = vmatpush2.msra.mxu0 0.0
    %779 = vmatprep.subr.mxu0 0.0
    %780 = vmatpush2.msra.mxu0 0.0
    %781 = vmatprep.subr.mxu0 0.0
    %782 = vmatpush2.msra.mxu0 0.0
    %783 = vmatprep.subr.mxu0 0.0
    %784 = vmatpush2.msra.mxu0 0.0
    %785 = vmatprep.subr.mxu0 0.0
    %786 = vmatpush2.msra.mxu0 0.0
    %787 = vmatprep.subr.mxu0 0.0
    %788 = vmatpush2.msra.mxu0 0.0
    %789 = vmatprep.subr.mxu0 0.0
    %790 = vmatpush2.msra.mxu0 0.0
    %791 = vmatprep.subr.mxu0 0.0
    %792 = vmatpush2.msra.mxu0 0.0
    %793 = vmatprep.subr.mxu0 0.0
    %794 = vmatpush2.msra.mxu0 0.0
    %795 = vmatprep.subr.mxu0 0.0
    %796 = vmatpush2.msra.mxu0 0.0
    %797 = vmatprep.subr.mxu0 0.0
    %798 = vmatpush2.msra.mxu0 0.0
    %799 = vmatprep.subr.mxu0 0.0
    %800 = vmatpush2.msra.mxu0 0.0
    %801 = vmatprep.subr.mxu0 0.0
    %802 = vmatpush2.msra.mxu0 0.0
    %803 = vmatprep.subr.mxu0 0.0
    %804 = vmatpush2.msra.mxu0 0.0
    %805 = vmatprep.subr.mxu0 0.0
    %806 = vmatpush2.msra.mxu0 0.0
    %807 = vmatprep.subr.mxu0 0.0
    %808 = vmatpush2.msra.mxu0 0.0
    %809 = vmatprep.mubr.f32.mxu0 0.0
    %810 = vmatmul.mubr.f32.gmra.mxu0 %v530
    %v811 = vpop.f32.mrf.mxu0
    %v812 = vadd.f32 %v741, %v811
    %v813 = vpop.f32.mrf.mxu0
    %v814 = vadd.f32 %v743, %v813
    %815 = vdwg.mxu0
    %816 = vmatprep.subr.mxu0 %v168
    %817 = vmatpush1.msra.mxu0 %v167
    %818 = vmatprep.subr.mxu0 %v164
    %819 = vmatpush1.msra.mxu0 %v163
    %820 = vmatprep.subr.mxu0 %v160
    %821 = vmatpush1.msra.mxu0 %v159
    %822 = vmatprep.subr.mxu0 %v156
    %823 = vmatpush1.msra.mxu0 %v155
    %824 = vmatprep.subr.mxu0 %v152
    %825 = vmatpush1.msra.mxu0 %v151
    %826 = vmatprep.subr.mxu0 %v148
    %827 = vmatpush1.msra.mxu0 %v147
    %828 = vmatprep.subr.mxu0 %v144
    %829 = vmatpush1.msra.mxu0 %v143
    %830 = vmatprep.subr.mxu0 %v140
    %831 = vmatpush1.msra.mxu0 %v139
    %832 = vmatprep.subr.mxu0 %v136
    %833 = vmatpush1.msra.mxu0 %v135
    %834 = vmatprep.subr.mxu0 %v132
    %835 = vmatpush1.msra.mxu0 %v131
    %836 = vmatprep.subr.mxu0 %v128
    %837 = vmatpush1.msra.mxu0 %v127
    %838 = vmatprep.subr.mxu0 %v124
    %839 = vmatpush1.msra.mxu0 %v123
    %840 = vmatprep.subr.mxu0 %v120
    %841 = vmatpush1.msra.mxu0 %v119
    %842 = vmatprep.subr.mxu0 %v116
    %843 = vmatpush1.msra.mxu0 %v115
    %844 = vmatprep.subr.mxu0 %v112
    %845 = vmatpush1.msra.mxu0 %v111
    %846 = vmatprep.subr.mxu0 %v108
    %847 = vmatpush1.msra.mxu0 %v107
    %848 = vmatprep.subr.mxu0 %v232
    %849 = vmatpush2.msra.mxu0 %v231
    %850 = vmatprep.subr.mxu0 %v228
    %851 = vmatpush2.msra.mxu0 %v227
    %852 = vmatprep.subr.mxu0 %v224
    %853 = vmatpush2.msra.mxu0 %v223
    %854 = vmatprep.subr.mxu0 %v220
    %855 = vmatpush2.msra.mxu0 %v219
    %856 = vmatprep.subr.mxu0 %v216
    %857 = vmatpush2.msra.mxu0 %v215
    %858 = vmatprep.subr.mxu0 %v212
    %859 = vmatpush2.msra.mxu0 %v211
    %860 = vmatprep.subr.mxu0 %v208
    %861 = vmatpush2.msra.mxu0 %v207
    %862 = vmatprep.subr.mxu0 %v204
    %863 = vmatpush2.msra.mxu0 %v203
    %864 = vmatprep.subr.mxu0 %v200
    %865 = vmatpush2.msra.mxu0 %v199
    %866 = vmatprep.subr.mxu0 %v196
    %867 = vmatpush2.msra.mxu0 %v195
    %868 = vmatprep.subr.mxu0 %v192
    %869 = vmatpush2.msra.mxu0 %v191
    %870 = vmatprep.subr.mxu0 %v188
    %871 = vmatpush2.msra.mxu0 %v187
    %872 = vmatprep.subr.mxu0 %v184
    %873 = vmatpush2.msra.mxu0 %v183
    %874 = vmatprep.subr.mxu0 %v180
    %875 = vmatpush2.msra.mxu0 %v179
    %876 = vmatprep.subr.mxu0 %v176
    %877 = vmatpush2.msra.mxu0 %v175
    %878 = vmatprep.subr.mxu0 %v172
    %879 = vmatpush2.msra.mxu0 %v171
    %880 = vmatprep.mubr.f32.mxu0 %v523
    %881 = vmatmul.mubr.f32.gmra.mxu0 %v101
    %v882 = vpop.f32.mrf.mxu0
    %v883 = vadd.f32 %v510, %v882
    %v884 = vpop.f32.mrf.mxu0
    %v885 = vadd.f32 %v514, %v884
    %886 = vdwg.mxu0
    %887 = vmatprep.subr.mxu0 %v296
    %888 = vmatpush1.msra.mxu0 %v295
    %889 = vmatprep.subr.mxu0 %v292
    %890 = vmatpush1.msra.mxu0 %v291
    %891 = vmatprep.subr.mxu0 %v288
    %892 = vmatpush1.msra.mxu0 %v287
    %893 = vmatprep.subr.mxu0 %v284
    %894 = vmatpush1.msra.mxu0 %v283
    %895 = vmatprep.subr.mxu0 %v280
    %896 = vmatpush1.msra.mxu0 %v279
    %897 = vmatprep.subr.mxu0 %v276
    %898 = vmatpush1.msra.mxu0 %v275
    %899 = vmatprep.subr.mxu0 %v272
    %900 = vmatpush1.msra.mxu0 %v271
    %901 = vmatprep.subr.mxu0 %v268
    %902 = vmatpush1.msra.mxu0 %v267
    %903 = vmatprep.subr.mxu0 %v264
    %904 = vmatpush1.msra.mxu0 %v263
    %905 = vmatprep.subr.mxu0 %v260
    %906 = vmatpush1.msra.mxu0 %v259
    %907 = vmatprep.subr.mxu0 %v256
    %908 = vmatpush1.msra.mxu0 %v255
    %909 = vmatprep.subr.mxu0 %v252
    %910 = vmatpush1.msra.mxu0 %v251
    %911 = vmatprep.subr.mxu0 %v248
    %912 = vmatpush1.msra.mxu0 %v247
    %913 = vmatprep.subr.mxu0 %v244
    %914 = vmatpush1.msra.mxu0 %v243
    %915 = vmatprep.subr.mxu0 %v240
    %916 = vmatpush1.msra.mxu0 %v239
    %917 = vmatprep.subr.mxu0 %v236
    %918 = vmatpush1.msra.mxu0 %v235
    %919 = vmatprep.subr.mxu0 %v360
    %920 = vmatpush2.msra.mxu0 %v359
    %921 = vmatprep.subr.mxu0 %v356
    %922 = vmatpush2.msra.mxu0 %v355
    %923 = vmatprep.subr.mxu0 %v352
    %924 = vmatpush2.msra.mxu0 %v351
    %925 = vmatprep.subr.mxu0 %v348
    %926 = vmatpush2.msra.mxu0 %v347
    %927 = vmatprep.subr.mxu0 %v344
    %928 = vmatpush2.msra.mxu0 %v343
    %929 = vmatprep.subr.mxu0 %v340
    %930 = vmatpush2.msra.mxu0 %v339
    %931 = vmatprep.subr.mxu0 %v336
    %932 = vmatpush2.msra.mxu0 %v335
    %933 = vmatprep.subr.mxu0 %v332
    %934 = vmatpush2.msra.mxu0 %v331
    %935 = vmatprep.subr.mxu0 %v328
    %936 = vmatpush2.msra.mxu0 %v327
    %937 = vmatprep.subr.mxu0 %v324
    %938 = vmatpush2.msra.mxu0 %v323
    %939 = vmatprep.subr.mxu0 %v320
    %940 = vmatpush2.msra.mxu0 %v319
    %941 = vmatprep.subr.mxu0 %v316
    %942 = vmatpush2.msra.mxu0 %v315
    %943 = vmatprep.subr.mxu0 %v312
    %944 = vmatpush2.msra.mxu0 %v311
    %945 = vmatprep.subr.mxu0 %v308
    %946 = vmatpush2.msra.mxu0 %v307
    %947 = vmatprep.subr.mxu0 %v304
    %948 = vmatpush2.msra.mxu0 %v303
    %949 = vmatprep.subr.mxu0 %v300
    %950 = vmatpush2.msra.mxu0 %v299
    %951 = vmatprep.mubr.f32.mxu0 %v524
    %952 = vmatmul.mubr.f32.gmra.mxu0 %v102
    %v953 = vpop.f32.mrf.mxu0
    %v954 = vadd.f32 %v883, %v953
    %v955 = vpop.f32.mrf.mxu0
    %v956 = vadd.f32 %v885, %v955
    %957 = vdwg.mxu0
    %958 = vmatprep.subr.mxu0 %v424
    %959 = vmatpush1.msra.mxu0 %v423
    %960 = vmatprep.subr.mxu0 %v420
    %961 = vmatpush1.msra.mxu0 %v419
    %962 = vmatprep.subr.mxu0 %v416
    %963 = vmatpush1.msra.mxu0 %v415
    %964 = vmatprep.subr.mxu0 %v412
    %965 = vmatpush1.msra.mxu0 %v411
    %966 = vmatprep.subr.mxu0 %v408
    %967 = vmatpush1.msra.mxu0 %v407
    %968 = vmatprep.subr.mxu0 %v404
    %969 = vmatpush1.msra.mxu0 %v403
    %970 = vmatprep.subr.mxu0 %v400
    %971 = vmatpush1.msra.mxu0 %v399
    %972 = vmatprep.subr.mxu0 %v396
    %973 = vmatpush1.msra.mxu0 %v395
    %974 = vmatprep.subr.mxu0 %v392
    %975 = vmatpush1.msra.mxu0 %v391
    %976 = vmatprep.subr.mxu0 %v388
    %977 = vmatpush1.msra.mxu0 %v387
    %978 = vmatprep.subr.mxu0 %v384
    %979 = vmatpush1.msra.mxu0 %v383
    %980 = vmatprep.subr.mxu0 %v380
    %981 = vmatpush1.msra.mxu0 %v379
    %982 = vmatprep.subr.mxu0 %v376
    %983 = vmatpush1.msra.mxu0 %v375
    %984 = vmatprep.subr.mxu0 %v372
    %985 = vmatpush1.msra.mxu0 %v371
    %986 = vmatprep.subr.mxu0 %v368
    %987 = vmatpush1.msra.mxu0 %v367
    %988 = vmatprep.subr.mxu0 %v364
    %989 = vmatpush1.msra.mxu0 %v363
    %990 = vmatprep.subr.mxu0 %v488
    %991 = vmatpush2.msra.mxu0 %v487
    %992 = vmatprep.subr.mxu0 %v484
    %993 = vmatpush2.msra.mxu0 %v483
    %994 = vmatprep.subr.mxu0 %v480
    %995 = vmatpush2.msra.mxu0 %v479
    %996 = vmatprep.subr.mxu0 %v476
    %997 = vmatpush2.msra.mxu0 %v475
    %998 = vmatprep.subr.mxu0 %v472
    %999 = vmatpush2.msra.mxu0 %v471
    %1000 = vmatprep.subr.mxu0 %v468
    %1001 = vmatpush2.msra.mxu0 %v467
    %1002 = vmatprep.subr.mxu0 %v464
    %1003 = vmatpush2.msra.mxu0 %v463
    %1004 = vmatprep.subr.mxu0 %v460
    %1005 = vmatpush2.msra.mxu0 %v459
    %1006 = vmatprep.subr.mxu0 %v456
    %1007 = vmatpush2.msra.mxu0 %v455
    %1008 = vmatprep.subr.mxu0 %v452
    %1009 = vmatpush2.msra.mxu0 %v451
    %1010 = vmatprep.subr.mxu0 %v448
    %1011 = vmatpush2.msra.mxu0 %v447
    %1012 = vmatprep.subr.mxu0 %v444
    %1013 = vmatpush2.msra.mxu0 %v443
    %1014 = vmatprep.subr.mxu0 %v440
    %1015 = vmatpush2.msra.mxu0 %v439
    %1016 = vmatprep.subr.mxu0 %v436
    %1017 = vmatpush2.msra.mxu0 %v435
    %1018 = vmatprep.subr.mxu0 %v432
    %1019 = vmatpush2.msra.mxu0 %v431
    %1020 = vmatprep.subr.mxu0 %v428
    %1021 = vmatpush2.msra.mxu0 %v427
    %1022 = vmatprep.mubr.f32.mxu0 %v525
    %1023 = vmatmul.mubr.f32.gmra.mxu0 %v103
    %v1024 = vpop.f32.mrf.mxu0
    %v1025 = vadd.f32 %v954, %v1024
    %v1026 = vpop.f32.mrf.mxu0
    %v1027 = vadd.f32 %v956, %v1026
    %1028 = vdwg.mxu0
    %1029 = vmatprep.subr.mxu0 0.0
    %1030 = vmatpush1.msra.mxu0 0.0
    %1031 = vmatprep.subr.mxu0 0.0
    %1032 = vmatpush1.msra.mxu0 0.0
    %1033 = vmatprep.subr.mxu0 0.0
    %1034 = vmatpush1.msra.mxu0 0.0
    %1035 = vmatprep.subr.mxu0 0.0
    %1036 = vmatpush1.msra.mxu0 0.0
    %1037 = vmatprep.subr.mxu0 0.0
    %1038 = vmatpush1.msra.mxu0 0.0
    %1039 = vmatprep.subr.mxu0 0.0
    %1040 = vmatpush1.msra.mxu0 0.0
    %1041 = vmatprep.subr.mxu0 0.0
    %1042 = vmatpush1.msra.mxu0 0.0
    %1043 = vmatprep.subr.mxu0 0.0
    %1044 = vmatpush1.msra.mxu0 0.0
    %1045 = vmatprep.subr.mxu0 0.0
    %1046 = vmatpush1.msra.mxu0 0.0
    %1047 = vmatprep.subr.mxu0 0.0
    %1048 = vmatpush1.msra.mxu0 0.0
    %1049 = vmatprep.subr.mxu0 0.0
    %1050 = vmatpush1.msra.mxu0 0.0
    %1051 = vmatprep.subr.mxu0 0.0
    %1052 = vmatpush1.msra.mxu0 0.0
    %1053 = vmatprep.subr.mxu0 0.0
    %1054 = vmatpush1.msra.mxu0 0.0
    %1055 = vmatprep.subr.mxu0 0.0
    %1056 = vmatpush1.msra.mxu0 0.0
    %1057 = vmatprep.subr.mxu0 %v496
    %1058 = vmatpush1.msra.mxu0 %v495
    %1059 = vmatprep.subr.mxu0 %v492
    %1060 = vmatpush1.msra.mxu0 %v491
    %1061 = vmatprep.subr.mxu0 0.0
    %1062 = vmatpush2.msra.mxu0 0.0
    %1063 = vmatprep.subr.mxu0 0.0
    %1064 = vmatpush2.msra.mxu0 0.0
    %1065 = vmatprep.subr.mxu0 0.0
    %1066 = vmatpush2.msra.mxu0 0.0
    %1067 = vmatprep.subr.mxu0 0.0
    %1068 = vmatpush2.msra.mxu0 0.0
    %1069 = vmatprep.subr.mxu0 0.0
    %1070 = vmatpush2.msra.mxu0 0.0
    %1071 = vmatprep.subr.mxu0 0.0
    %1072 = vmatpush2.msra.mxu0 0.0
    %1073 = vmatprep.subr.mxu0 0.0
    %1074 = vmatpush2.msra.mxu0 0.0
    %1075 = vmatprep.subr.mxu0 0.0
    %1076 = vmatpush2.msra.mxu0 0.0
    %1077 = vmatprep.subr.mxu0 0.0
    %1078 = vmatpush2.msra.mxu0 0.0
    %1079 = vmatprep.subr.mxu0 0.0
    %1080 = vmatpush2.msra.mxu0 0.0
    %1081 = vmatprep.subr.mxu0 0.0
    %1082 = vmatpush2.msra.mxu0 0.0
    %1083 = vmatprep.subr.mxu0 0.0
    %1084 = vmatpush2.msra.mxu0 0.0
    %1085 = vmatprep.subr.mxu0 0.0
    %1086 = vmatpush2.msra.mxu0 0.0
    %1087 = vmatprep.subr.mxu0 0.0
    %1088 = vmatpush2.msra.mxu0 0.0
    %1089 = vmatprep.subr.mxu0 0.0
    %1090 = vmatpush2.msra.mxu0 0.0
    %1091 = vmatprep.subr.mxu0 0.0
    %1092 = vmatpush2.msra.mxu0 0.0
    %1093 = vmatprep.mubr.f32.mxu0 0.0
    %1094 = vmatmul.mubr.f32.gmra.mxu0 %v530
    %v1095 = vpop.f32.mrf.mxu0
    %v1096 = vadd.f32 %v1025, %v1095
    %v1097 = vpop.f32.mrf.mxu0
    %v1098 = vadd.f32 %v1027, %v1097
    %1099 = vdwg.mxu0
    %vm1100 = vcmask 1043456
    %v1101 = vsel %vm1100, %v812, 0.0
    %v1102 = vrot.slane %v1101, 4
    %v1103 = vadd.f32 %v1101, %v1102
    %v1104 = vrot.slane %v1103, 2
    %v1105 = vadd.f32 %v1103, %v1104
    %v1106 = vrot.slane %v1105, 1
    %v1107 = vadd.f32 %v1105, %v1106
    %v1108 = vsel %vm1100, %v814, 0.0
    %v1109 = vrot.slane %v1108, 4
    %v1110 = vadd.f32 %v1108, %v1109
    %v1111 = vrot.slane %v1110, 2
    %v1112 = vadd.f32 %v1110, %v1111
    %v1113 = vrot.slane %v1112, 1
    %v1114 = vadd.f32 %v1112, %v1113
    %v1115 = vsel %vm1100, %v1096, 0.0
    %v1116 = vrot.slane %v1115, 4
    %v1117 = vadd.f32 %v1115, %v1116
    %v1118 = vrot.slane %v1117, 2
    %v1119 = vadd.f32 %v1117, %v1118
    %v1120 = vrot.slane %v1119, 1
    %v1121 = vadd.f32 %v1119, %v1120
    %v1122 = vsel %vm1100, %v1098, 0.0
    %v1123 = vrot.slane %v1122, 4
    %v1124 = vadd.f32 %v1122, %v1123
    %v1125 = vrot.slane %v1124, 2
    %v1126 = vadd.f32 %v1124, %v1125
    %v1127 = vrot.slane %v1126, 1
    %v1128 = vadd.f32 %v1126, %v1127
    %v1129 = vrcp.pop 4.0
    %v1130 = vmul.f32 %v1107, %v1129
    %v1131 = vmul.f32 %v1114, %v1129
    %v1132 = vmul.f32 %v1121, %v1129
    %v1133 = vmul.f32 %v1128, %v1129
    %v1134 = vsub.f32 %v812, %v1130
    %v1135 = vsub.f32 %v814, %v1131
    %v1136 = vsub.f32 %v1096, %v1132
    %v1137 = vsub.f32 %v1098, %v1133
    %v1138 = vmul.f32 %v1134, %v1134
    %v1139 = vmul.f32 %v1135, %v1135
    %v1140 = vmul.f32 %v1136, %v1136
    %v1141 = vmul.f32 %v1137, %v1137
    %v1142 = vsel %vm1100, %v1138, 0.0
    %v1143 = vrot.slane %v1142, 4
    %v1144 = vadd.f32 %v1142, %v1143
    %v1145 = vrot.slane %v1144, 2
    %v1146 = vadd.f32 %v1144, %v1145
    %v1147 = vrot.slane %v1146, 1
    %v1148 = vadd.f32 %v1146, %v1147
    %v1149 = vsel %vm1100, %v1139, 0.0
    %v1150 = vrot.slane %v1149, 4
    %v1151 = vadd.f32 %v1149, %v1150
    %v1152 = vrot.slane %v1151, 2
    %v1153 = vadd.f32 %v1151, %v1152
    %v1154 = vrot.slane %v1153, 1
    %v1155 = vadd.f32 %v1153, %v1154
    %v1156 = vsel %vm1100, %v1140, 0.0
    %v1157 = vrot.slane %v1156, 4
    %v1158 = vadd.f32 %v1156, %v1157
    %v1159 = vrot.slane %v1158, 2
    %v1160 = vadd.f32 %v1158, %v1159
    %v1161 = vrot.slane %v1160, 1
    %v1162 = vadd.f32 %v1160, %v1161
    %v1163 = vsel %vm1100, %v1141, 0.0
    %v1164 = vrot.slane %v1163, 4
    %v1165 = vadd.f32 %v1163, %v1164
    %v1166 = vrot.slane %v1165, 2
    %v1167 = vadd.f32 %v1165, %v1166
    %v1168 = vrot.slane %v1167, 1
    %v1169 = vadd.f32 %v1167, %v1168
    %v1170 = vmul.f32 %v1148, %v1129
    %v1171 = vmul.f32 %v1155, %v1129
    %v1172 = vmul.f32 %v1162, %v1129
    %v1173 = vmul.f32 %v1169, %v1129
    %v1174 = vld [vmem:[#allocation7] sm:$0xf]
    %v1175 = vadd.f32 %v1170, 1e-05
    %v1176 = vadd.f32 %v1171, 1e-05
    %v1177 = vadd.f32 %v1172, 1e-05
    %v1178 = vadd.f32 %v1173, 1e-05
    %v1179 = vrsqrt.pop %v1175
    %v1180 = vrsqrt.pop %v1176
    %v1181 = vrsqrt.pop %v1177
    %v1182 = vrsqrt.pop %v1178
    %v1187 = vcombine.low %v1179, %v1180
    %v1188 = vcombine.low %v1181, %v1182
    %v1190 = vunpack.c.l.s4 1966171168
    %v1191 = vunpack.c.0.s8 %v1190
    %v1192 = vlaneseq
    %v1193 = vshrl.u32 %v1192, 7
    %v1194 = vsub.s32 %v1191, %v1193
    %v1195 = vrot.slane %v1187, %v1194
    %v1197 = vunpack.c.l.s4 1966171168
    %v1198 = vunpack.c.0.s8 %v1197
    %v1199 = vlaneseq
    %v1200 = vshrl.u32 %v1199, 7
    %v1201 = vsub.s32 %v1198, %v1200
    %v1202 = vrot.slane %v1188, %v1201
    %v1203 = vcombine.low %v1195, %v1202
    %v1205 = vunpack.c.l.s4 1966171168
    %v1206 = vunpack.c.0.s8 %v1205
    %v1207 = vlaneseq
    %v1208 = vshrl.u32 %v1207, 7
    %v1209 = vsub.s32 %v1206, %v1208
    %v1210 = vrot.slane %v1203, %v1209
    %v1212 = vmul.f32 %v1174, %v1210
    %v1214 = vlaneseq
    %v1215 = vshrl.u32 %v1214, 7
    %v1216 = vsub.s32 0, %v1215
    %v1217 = vrot.slane %v1212, %v1216
    %v1218 = vlaneseq
    %v1219 = vshrl.u32 %v1218, 7
    %v1220 = vsub.s32 1, %v1219
    %v1221 = vrot.slane %v1212, %v1220
    %v1222 = vlaneseq
    %v1223 = vshrl.u32 %v1222, 7
    %v1224 = vsub.s32 2, %v1223
    %v1225 = vrot.slane %v1212, %v1224
    %v1226 = vlaneseq
    %v1227 = vshrl.u32 %v1226, 7
    %v1228 = vsub.s32 3, %v1227
    %v1229 = vrot.slane %v1212, %v1228
    %v1234 = vmul.f32 %v1134, %v1217
    %v1235 = vmul.f32 %v1135, %v1221
    %v1236 = vmul.f32 %v1136, %v1225
    %v1237 = vmul.f32 %v1137, %v1229
    %v1238 = vld [vmem:[#allocation8] sm:$0xf]
    %v1240 = vlaneseq
    %v1241 = vshrl.u32 %v1240, 7
    %v1242 = vsub.s32 0, %v1241
    %v1243 = vrot.slane %v1238, %v1242
    %v1244 = vlaneseq
    %v1245 = vshrl.u32 %v1244, 7
    %v1246 = vsub.s32 1, %v1245
    %v1247 = vrot.slane %v1238, %v1246
    %v1248 = vlaneseq
    %v1249 = vshrl.u32 %v1248, 7
    %v1250 = vsub.s32 2, %v1249
    %v1251 = vrot.slane %v1238, %v1250
    %v1252 = vlaneseq
    %v1253 = vshrl.u32 %v1252, 7
    %v1254 = vsub.s32 3, %v1253
    %v1255 = vrot.slane %v1238, %v1254
    %v1260 = vadd.f32 %v1234, %v1243
    %v1261 = vadd.f32 %v1235, %v1247
    %v1262 = vadd.f32 %v1236, %v1251
    %v1263 = vadd.f32 %v1237, %v1255
    %v1264 = vmax.f32 %v1260, 0.0
    %v1265 = vmax.f32 %v1261, 0.0
    %v1266 = vmax.f32 %v1262, 0.0
    %v1267 = vmax.f32 %v1263, 0.0
    %v1268 = vld [vmem:[#allocation10] sm:$0xff]
    %v1269 = vld [vmem:[#allocation10 + $0x8] sm:$0xff]
    %v1270 = vld [vmem:[#allocation10 + $0x10] sm:$0xff]
    %v1271 = vld [vmem:[#allocation10 + $0x18] sm:$0xff]
    %v1272 = vld [vmem:[#allocation10 + $0x20] sm:$0xff]
    %v1273 = vld [vmem:[#allocation10 + $0x28] sm:$0xff]
    %v1274 = vld [vmem:[#allocation10 + $0x30] sm:$0xff]
    %v1275 = vld [vmem:[#allocation10 + $0x38] sm:$0xff]
    %v1276 = vld [vmem:[#allocation10 + $0x40] sm:$0xff]
    %v1277 = vld [vmem:[#allocation10 + $0x48] sm:$0xff]
    %v1278 = vld [vmem:[#allocation10 + $0x50] sm:$0xff]
    %v1279 = vld [vmem:[#allocation10 + $0x58] sm:$0xff]
    %v1280 = vld [vmem:[#allocation10 + $0x60] sm:$0xff]
    %v1281 = vld [vmem:[#allocation10 + $0x68] sm:$0xff]
    %v1282 = vld [vmem:[#allocation10 + $0x70] sm:$0xff]
    %v1283 = vld [vmem:[#allocation10 + $0x78] sm:$0xff]
    %v1284 = vld [vmem:[#allocation10 + $0x80] sm:$0xff]
    %v1285 = vld [vmem:[#allocation10 + $0x88] sm:$0xff]
    %v1286 = vld [vmem:[#allocation10 + $0x90] sm:$0xff]
    %v1287 = vld [vmem:[#allocation10 + $0x98] sm:$0xff]
    %v1288 = vld [vmem:[#allocation10 + $0xa0] sm:$0xff]
    %v1289 = vld [vmem:[#allocation10 + $0xa8] sm:$0xff]
    %v1290 = vld [vmem:[#allocation10 + $0xb0] sm:$0xff]
    %v1291 = vld [vmem:[#allocation10 + $0xb8] sm:$0xff]
    %v1292 = vld [vmem:[#allocation10 + $0xc0] sm:$0xff]
    %v1293 = vld [vmem:[#allocation10 + $0xc8] sm:$0xff]
    %v1294 = vld [vmem:[#allocation10 + $0xd0] sm:$0xff]
    %v1295 = vld [vmem:[#allocation10 + $0xd8] sm:$0xff]
    %v1296 = vld [vmem:[#allocation10 + $0xe0] sm:$0xff]
    %v1297 = vld [vmem:[#allocation10 + $0xe8] sm:$0xff]
    %v1298 = vld [vmem:[#allocation10 + $0xf0] sm:$0xff]
    %v1299 = vld [vmem:[#allocation10 + $0xf8] sm:$0xff]
    %v1300 = vld [vmem:[#allocation10 + $0x100] sm:$0xff]
    %v1301 = vld [vmem:[#allocation10 + $0x108] sm:$0xff]
    %v1302 = vld [vmem:[#allocation10 + $0x110] sm:$0xff]
    %v1303 = vld [vmem:[#allocation10 + $0x118] sm:$0xff]
    %v1304 = vld [vmem:[#allocation10 + $0x120] sm:$0xff]
    %v1305 = vld [vmem:[#allocation10 + $0x128] sm:$0xff]
    %v1306 = vld [vmem:[#allocation10 + $0x130] sm:$0xff]
    %v1307 = vld [vmem:[#allocation10 + $0x138] sm:$0xff]
    %v1308 = vld [vmem:[#allocation10 + $0x140] sm:$0xff]
    %v1309 = vld [vmem:[#allocation10 + $0x148] sm:$0xff]
    %v1310 = vld [vmem:[#allocation10 + $0x150] sm:$0xff]
    %v1311 = vld [vmem:[#allocation10 + $0x158] sm:$0xff]
    %v1312 = vld [vmem:[#allocation10 + $0x160] sm:$0xff]
    %v1313 = vld [vmem:[#allocation10 + $0x168] sm:$0xff]
    %v1314 = vld [vmem:[#allocation10 + $0x170] sm:$0xff]
    %v1315 = vld [vmem:[#allocation10 + $0x178] sm:$0xff]
    %v1316 = vld [vmem:[#allocation10 + $0x180] sm:$0xff]
    %v1317 = vld [vmem:[#allocation10 + $0x188] sm:$0xff]
    %v1318 = vld [vmem:[#allocation10 + $0x190] sm:$0xff]
    %v1319 = vld [vmem:[#allocation10 + $0x198] sm:$0xff]
    %v1320 = vld [vmem:[#allocation10 + $0x1a0] sm:$0xff]
    %v1321 = vld [vmem:[#allocation10 + $0x1a8] sm:$0xff]
    %v1322 = vld [vmem:[#allocation10 + $0x1b0] sm:$0xff]
    %v1323 = vld [vmem:[#allocation10 + $0x1b8] sm:$0xff]
    %v1324 = vld [vmem:[#allocation10 + $0x1c0] sm:$0xff]
    %v1325 = vld [vmem:[#allocation10 + $0x1c8] sm:$0xff]
    %v1326 = vld [vmem:[#allocation10 + $0x1d0] sm:$0xff]
    %v1327 = vld [vmem:[#allocation10 + $0x1d8] sm:$0xff]
    %v1328 = vld [vmem:[#allocation10 + $0x1e0] sm:$0xff]
    %v1329 = vld [vmem:[#allocation10 + $0x1e8] sm:$0xff]
    %v1330 = vld [vmem:[#allocation10 + $0x1f0] sm:$0xff]
    %v1331 = vld [vmem:[#allocation10 + $0x1f8] sm:$0xff]
    %v1332 = vld [vmem:[#allocation11] sm:$0x1]
    %v1334 = vlaneseq
    %v1335 = vshrl.u32 %v1334, 7
    %v1336 = vsub.s32 0, %v1335
    %v1337 = vrot.slane %v1332, %v1336
    %1339 = vmatprep.subr.mxu0 0.0
    %1340 = vmatpush1.msra.mxu0 %v1283
    %1341 = vmatprep.subr.mxu0 0.0
    %1342 = vmatpush1.msra.mxu0 %v1282
    %1343 = vmatprep.subr.mxu0 0.0
    %1344 = vmatpush1.msra.mxu0 %v1281
    %1345 = vmatprep.subr.mxu0 0.0
    %1346 = vmatpush1.msra.mxu0 %v1280
    %1347 = vmatprep.subr.mxu0 0.0
    %1348 = vmatpush1.msra.mxu0 %v1279
    %1349 = vmatprep.subr.mxu0 0.0
    %1350 = vmatpush1.msra.mxu0 %v1278
    %1351 = vmatprep.subr.mxu0 0.0
    %1352 = vmatpush1.msra.mxu0 %v1277
    %1353 = vmatprep.subr.mxu0 0.0
    %1354 = vmatpush1.msra.mxu0 %v1276
    %1355 = vmatprep.subr.mxu0 0.0
    %1356 = vmatpush1.msra.mxu0 %v1275
    %1357 = vmatprep.subr.mxu0 0.0
    %1358 = vmatpush1.msra.mxu0 %v1274
    %1359 = vmatprep.subr.mxu0 0.0
    %1360 = vmatpush1.msra.mxu0 %v1273
    %1361 = vmatprep.subr.mxu0 0.0
    %1362 = vmatpush1.msra.mxu0 %v1272
    %1363 = vmatprep.subr.mxu0 0.0
    %1364 = vmatpush1.msra.mxu0 %v1271
    %1365 = vmatprep.subr.mxu0 0.0
    %1366 = vmatpush1.msra.mxu0 %v1270
    %1367 = vmatprep.subr.mxu0 0.0
    %1368 = vmatpush1.msra.mxu0 %v1269
    %1369 = vmatprep.subr.mxu0 0.0
    %1370 = vmatpush1.msra.mxu0 %v1268
    %1371 = vmatprep.subr.mxu0 0.0
    %1372 = vmatpush2.msra.mxu0 %v1299
    %1373 = vmatprep.subr.mxu0 0.0
    %1374 = vmatpush2.msra.mxu0 %v1298
    %1375 = vmatprep.subr.mxu0 0.0
    %1376 = vmatpush2.msra.mxu0 %v1297
    %1377 = vmatprep.subr.mxu0 0.0
    %1378 = vmatpush2.msra.mxu0 %v1296
    %1379 = vmatprep.subr.mxu0 0.0
    %1380 = vmatpush2.msra.mxu0 %v1295
    %1381 = vmatprep.subr.mxu0 0.0
    %1382 = vmatpush2.msra.mxu0 %v1294
    %1383 = vmatprep.subr.mxu0 0.0
    %1384 = vmatpush2.msra.mxu0 %v1293
    %1385 = vmatprep.subr.mxu0 0.0
    %1386 = vmatpush2.msra.mxu0 %v1292
    %1387 = vmatprep.subr.mxu0 0.0
    %1388 = vmatpush2.msra.mxu0 %v1291
    %1389 = vmatprep.subr.mxu0 0.0
    %1390 = vmatpush2.msra.mxu0 %v1290
    %1391 = vmatprep.subr.mxu0 0.0
    %1392 = vmatpush2.msra.mxu0 %v1289
    %1393 = vmatprep.subr.mxu0 0.0
    %1394 = vmatpush2.msra.mxu0 %v1288
    %1395 = vmatprep.subr.mxu0 0.0
    %1396 = vmatpush2.msra.mxu0 %v1287
    %1397 = vmatprep.subr.mxu0 0.0
    %1398 = vmatpush2.msra.mxu0 %v1286
    %1399 = vmatprep.subr.mxu0 0.0
    %1400 = vmatpush2.msra.mxu0 %v1285
    %1401 = vmatprep.subr.mxu0 0.0
    %1402 = vmatpush2.msra.mxu0 %v1284
    %1403 = vmatprep.mubr.f32.mxu0 %v1265
    %1404 = vmatmul.mubr.f32.gmra.mxu0 %v1264
    %v1405 = vpop.f32.mrf.mxu0
    %v1406 = vadd.f32 %v1337, %v1405
    %v1407 = vpop.f32.mrf.mxu0
    %1408 = vdwg.mxu0
    %1409 = vmatprep.subr.mxu0 0.0
    %1410 = vmatpush1.msra.mxu0 %v1315
    %1411 = vmatprep.subr.mxu0 0.0
    %1412 = vmatpush1.msra.mxu0 %v1314
    %1413 = vmatprep.subr.mxu0 0.0
    %1414 = vmatpush1.msra.mxu0 %v1313
    %1415 = vmatprep.subr.mxu0 0.0
    %1416 = vmatpush1.msra.mxu0 %v1312
    %1417 = vmatprep.subr.mxu0 0.0
    %1418 = vmatpush1.msra.mxu0 %v1311
    %1419 = vmatprep.subr.mxu0 0.0
    %1420 = vmatpush1.msra.mxu0 %v1310
    %1421 = vmatprep.subr.mxu0 0.0
    %1422 = vmatpush1.msra.mxu0 %v1309
    %1423 = vmatprep.subr.mxu0 0.0
    %1424 = vmatpush1.msra.mxu0 %v1308
    %1425 = vmatprep.subr.mxu0 0.0
    %1426 = vmatpush1.msra.mxu0 %v1307
    %1427 = vmatprep.subr.mxu0 0.0
    %1428 = vmatpush1.msra.mxu0 %v1306
    %1429 = vmatprep.subr.mxu0 0.0
    %1430 = vmatpush1.msra.mxu0 %v1305
    %1431 = vmatprep.subr.mxu0 0.0
    %1432 = vmatpush1.msra.mxu0 %v1304
    %1433 = vmatprep.subr.mxu0 0.0
    %1434 = vmatpush1.msra.mxu0 %v1303
    %1435 = vmatprep.subr.mxu0 0.0
    %1436 = vmatpush1.msra.mxu0 %v1302
    %1437 = vmatprep.subr.mxu0 0.0
    %1438 = vmatpush1.msra.mxu0 %v1301
    %1439 = vmatprep.subr.mxu0 0.0
    %1440 = vmatpush1.msra.mxu0 %v1300
    %1441 = vmatprep.subr.mxu0 0.0
    %1442 = vmatpush2.msra.mxu0 %v1331
    %1443 = vmatprep.subr.mxu0 0.0
    %1444 = vmatpush2.msra.mxu0 %v1330
    %1445 = vmatprep.subr.mxu0 0.0
    %1446 = vmatpush2.msra.mxu0 %v1329
    %1447 = vmatprep.subr.mxu0 0.0
    %1448 = vmatpush2.msra.mxu0 %v1328
    %1449 = vmatprep.subr.mxu0 0.0
    %1450 = vmatpush2.msra.mxu0 %v1327
    %1451 = vmatprep.subr.mxu0 0.0
    %1452 = vmatpush2.msra.mxu0 %v1326
    %1453 = vmatprep.subr.mxu0 0.0
    %1454 = vmatpush2.msra.mxu0 %v1325
    %1455 = vmatprep.subr.mxu0 0.0
    %1456 = vmatpush2.msra.mxu0 %v1324
    %1457 = vmatprep.subr.mxu0 0.0
    %1458 = vmatpush2.msra.mxu0 %v1323
    %1459 = vmatprep.subr.mxu0 0.0
    %1460 = vmatpush2.msra.mxu0 %v1322
    %1461 = vmatprep.subr.mxu0 0.0
    %1462 = vmatpush2.msra.mxu0 %v1321
    %1463 = vmatprep.subr.mxu0 0.0
    %1464 = vmatpush2.msra.mxu0 %v1320
    %1465 = vmatprep.subr.mxu0 0.0
    %1466 = vmatpush2.msra.mxu0 %v1319
    %1467 = vmatprep.subr.mxu0 0.0
    %1468 = vmatpush2.msra.mxu0 %v1318
    %1469 = vmatprep.subr.mxu0 0.0
    %1470 = vmatpush2.msra.mxu0 %v1317
    %1471 = vmatprep.subr.mxu0 0.0
    %1472 = vmatpush2.msra.mxu0 %v1316
    %1473 = vmatprep.mubr.f32.mxu0 %v1267
    %1474 = vmatmul.mubr.f32.gmra.mxu0 %v1266
    %v1475 = vpop.f32.mrf.mxu0
    %v1476 = vadd.f32 %v1406, %v1475
    %v1477 = vpop.f32.mrf.mxu0
    %1478 = vdwg.mxu0
    %1479 = vst [vmem:[#allocation13] sm:$0xf] %v1476
    // Predicated region
    $region54: #{_dnn_forward_jit.1} parent=1 // pred_check
      _
    $region55: #{_dnn_forward_jit.1} parent=1 // pred_check_branch
      %1481 = sbr.rel (0) target = $region57
    $region56: #{_dnn_forward_jit.1} parent=1 // pred_region
      %s1483 = ssub.s32 64, 64
      %1484 = vsyncadd [#allocation4], %s1483
      %s1486 = sshll.u32 [#allocation13], 4
      %s1487 = int_to_ptr.vmem [resolvable:$true] %s1486
      %1489 = dma.vmem_to_hbm [thread:$0]  %s1487, 64, %s7, [#allocation4]
    $region57: #{_dnn_forward_jit.1} parent=1 // pred_fallthru
      _
    // Predicated region
    $region58: #{_dnn_forward_jit.1} parent=1 // pred_check
      _
    $region59: #{_dnn_forward_jit.1} parent=1 // pred_check_branch
      %1491 = sbr.rel (0) target = $region61
    $region60: #{_dnn_forward_jit.1} parent=1 // pred_region
      %1492 = dma.done [#allocation4], 64
    $region61: #{_dnn_forward_jit.1} parent=1 // pred_fallthru
      _
    %1493 = vsyncpa [#allocation3], 1
    %1494 = vsyncpa [#allocation6], 1
    %1495 = vsyncpa [#allocation9], 1
    %1496 = vsyncpa [#allocation12], 1
    %1497 = vsyncpa [#allocation4], 1

</llo_original>
